<compile_context>
chip_gen: v5e
topology: v5e:2x2
jax: 0.10.0
libtpu: 0.0.40
codegen_flags: <defaults>
</compile_context>

<pallas_src>
import jax
import jax.numpy as jnp
from jax import lax
from jax.experimental import pallas as pl
from jax.experimental.pallas import tpu as pltpu


MATMUL_DTYPE = jnp.bfloat16   # MXU operand dtype; accumulation & gate math stay f32.


def _vmem_capacity_bytes():
    try:
        info = pltpu.get_tpu_info()
        return int(getattr(info, "vmem_capacity_bytes", 64 * 1024 * 1024))
    except Exception:
        return 64 * 1024 * 1024


def _big_vmem():
    # v5e / v6e have 128 MiB VMEM, v7x only 64 MiB per TensorCore.
    return _vmem_capacity_bytes() >= 100 * 1024 * 1024


def _pick_tile(n, target, align):
    """Largest `align`-multiple divisor of n <= target (n must be align-padded)."""
    if n <= target:
        return n
    t = (target // align) * align
    while t >= align:
        if n % t == 0:
            return t
        t -= align
    return n


def _pick_time_chunk(T, Bp, E, H, mm_bytes, budget_bytes):
    """Largest divisor of T whose chunk (2x x, 2x hs, gi scratch) fits the budget."""
    per_t = Bp * (2 * E * mm_bytes + 2 * H * 4 + 3 * H * 4)
    tc = max(1, min(T, budget_bytes // max(per_t, 1)))
    while T % tc:
        tc -= 1
    return tc


# ----------------------------------------------------------------------------
# Phase 1: GRU recurrence (T-chunked grid; fused gate matmuls).
# ----------------------------------------------------------------------------
def _gru_recurrence_kernel(
        x_ref,          # (Tc*Bp, E)  embedded inputs for this time chunk
        h0_ref,         # (Bp, H)     initial hidden state
        wih_ref,        # (E, 3H)     input->gate weights, gates r|z|n on lanes
        whh_ref,        # (H, 3H)     hidden->gate weights
        b_i_ref,        # (1, 3H)     fused biases (b_ih+b_hh for r,z; b_ih for n)
        b_hn_ref,       # (1, H)      b_hh for n (must stay inside r*(...))
        hs_ref,         # (Tc*Bp, H)  output hidden states for this chunk
        h_scr,          # (Bp, H) f32 persistent hidden-state carry
        gi_scr):        # (Tc*Bp, 3H) f32 input->gate pre-pass scratch
    Bp, H = h_scr.shape
    Tc = x_ref.shape[0] // Bp

    @pl.when(pl.program_id(0) == 0)
    def _():
        h_scr[...] = h0_ref[...]

    # ---- pre-pass: all input->gate contributions of the chunk in ONE matmul ----
    gi_scr[...] = (jnp.dot(x_ref[...], wih_ref[...],
                           preferred_element_type=jnp.float32) + b_i_ref[...])

    # ---- hoisted loop invariants ----
    b_hn = jnp.broadcast_to(b_hn_ref[...], (Bp, H))
    mm_dtype = whh_ref.dtype

    # TODO(synk): stage whh in the MXU once via pltpu.matmul_push_rhs /
    # matmul_acc_lhs / matmul_pop so the weight push is removed from the serial
    # per-timestep path entirely.
    def step(t, carry):
        row = pl.multiple_of(t * Bp, 8)           # Bp is a multiple of 8
        h_prev = h_scr[...]                       # (Bp, H) f32
        # single fused hidden->gate matmul: one RHS push per step instead of 3
        gh = jnp.dot(h_prev.astype(mm_dtype), whh_ref[...],
                     preferred_element_type=jnp.float32)      # (Bp, 3H)
        gi = gi_scr[pl.ds(row, Bp), :]                        # (Bp, 3H)
        r = jax.nn.sigmoid(gi[:, 0 * H:1 * H] + gh[:, 0 * H:1 * H])
        z = jax.nn.sigmoid(gi[:, 1 * H:2 * H] + gh[:, 1 * H:2 * H])
        n = jnp.tanh(gi[:, 2 * H:3 * H] + r * (gh[:, 2 * H:3 * H] + b_hn))
        h_new = (1.0 - z) * n + z * h_prev
        h_scr[...] = h_new
        hs_ref[pl.ds(row, Bp), :] = h_new         # full-sublane store
        return carry

    # Unroll tied to H so large-H configs don't spill on the serial path.
    unroll = max(1, min(8, 4096 // max(H, 1)))
    if Tc <= unroll:
        unroll = True
    lax.fori_loop(0, Tc, step, 0, unroll=unroll)


def _gru(x_flat, h0, wih_cat, whh_cat, b_i, b_hn, T, Bp):
    E = x_flat.shape[1]
    H = h0.shape[1]
    big = _big_vmem()
    mm_bytes = jnp.dtype(MATMUL_DTYPE).itemsize
    budget = (64 if big else 24) * 1024 * 1024
    Tc = _pick_time_chunk(T, Bp, E, H, mm_bytes, budget)

    # TODO(synk): on v7x with Bp >= 16, add a leading 'parallel' batch-half axis
    # (or core_map) so both TensorCores work on the latency-bound recurrence.
    return pl.pallas_call(
        _gru_recurrence_kernel,
        out_shape=jax.ShapeDtypeStruct((T * Bp, H), jnp.float32),
        grid=(T // Tc,),
        in_specs=[
            pl.BlockSpec((Tc * Bp, E), lambda c: (c, 0)),
            pl.BlockSpec((Bp, H), lambda c: (0, 0)),
            pl.BlockSpec((E, 3 * H), lambda c: (0, 0)),
            pl.BlockSpec((H, 3 * H), lambda c: (0, 0)),
            pl.BlockSpec((1, 3 * H), lambda c: (0, 0)),
            pl.BlockSpec((1, H), lambda c: (0, 0)),
        ],
        out_specs=pl.BlockSpec((Tc * Bp, H), lambda c: (c, 0)),
        scratch_shapes=[
            pltpu.VMEM((Bp, H), jnp.float32),          # hidden-state carry
            pltpu.VMEM((Tc * Bp, 3 * H), jnp.float32), # fused gi pre-pass
        ],
        compiler_params=pltpu.CompilerParams(
            dimension_semantics=("arbitrary",),
            vmem_limit_bytes=(96 if big else 48) * 1024 * 1024),
    )(x_flat, h0, wih_cat, whh_cat, b_i, b_hn)


# ----------------------------------------------------------------------------
# Phase 2: output projection, tiled over (N = Vp padded, M = B*T padded).
# Grid is (V-tiles, M-tiles): the M axis is innermost, so each (H, tn) weight
# block stays resident and w_fc is streamed from HBM exactly once.
# ----------------------------------------------------------------------------
def _proj_kernel(h_ref, w_ref, b_ref, o_ref):
    o_ref[...] = (jnp.dot(h_ref[...], w_ref[...],
                          preferred_element_type=jnp.float32)
                  + b_ref[...]).astype(o_ref.dtype)


def _project(hs_bm, wfc_t, bfc, V):
    M, H = hs_bm.shape
    Vp = wfc_t.shape[1]                      # already padded to a multiple of 128
    Mp = -(-M // 8) * 8
    if Mp != M:
        hs_bm = jnp.pad(hs_bm, ((0, Mp - M), (0, 0)))

    big = _big_vmem()
    tm = _pick_tile(Mp, 1024 if big else 256, 8)    # sublane-aligned M tile
    tn = _pick_tile(Vp, 512, 128)                   # lane-dense V tile

    out = pl.pallas_call(
        _proj_kernel,
        out_shape=jax.ShapeDtypeStruct((Mp, Vp), jnp.float32),
        grid=(Vp // tn, Mp // tm),           # M innermost -> weight block reused
        in_specs=[
            pl.BlockSpec((tm, H), lambda j, i: (i, 0)),
            pl.BlockSpec((H, tn), lambda j, i: (0, j)),
            pl.BlockSpec((1, tn), lambda j, i: (0, j)),
        ],
        out_specs=pl.BlockSpec((tm, tn), lambda j, i: (i, j)),
        compiler_params=pltpu.CompilerParams(
            dimension_semantics=("parallel", "parallel"),
            vmem_limit_bytes=(64 if big else 40) * 1024 * 1024),
    )(hs_bm, wfc_t, bfc)
    return out[:M, :V]


# ----------------------------------------------------------------------------
# One-time parameter preprocessing (hoisted out of the per-call path).
# ----------------------------------------------------------------------------
def prepare_params(params):
    mm = MATMUL_DTYPE
    emb_w = params["emb_w"]                  # (V, E), row 0 zeroed (padding_idx=0)
    w_ih, w_hh = params["w_ih"], params["w_hh"]   # (3H, E), (3H, H), gate order r,z,n
    b_ih, b_hh = params["b_ih"], params["b_hh"]   # (3H,)
    w_fc, b_fc = params["w_fc"], params["b_fc"]   # (V, H), (V,)
    H = w_hh.shape[1]
    V = w_fc.shape[0]
    Vp = -(-V // 128) * 128                  # pad vocab for lane-dense tiles

    wfc_t = w_fc.T.astype(mm)                # (H, V)
    bfc = b_fc.reshape(1, V).astype(jnp.float32)
    if Vp != V:
        wfc_t = jnp.pad(wfc_t, ((0, 0), (0, Vp - V)))
        bfc = jnp.pad(bfc, ((0, 0), (0, Vp - V)))

    b_i = jnp.concatenate([
        b_ih[0 * H:1 * H] + b_hh[0 * H:1 * H],   # r: fold both biases
        b_ih[1 * H:2 * H] + b_hh[1 * H:2 * H],   # z: fold both biases
        b_ih[2 * H:3 * H],                       # n: input bias only
    ]).reshape(1, 3 * H).astype(jnp.float32)

    return {
        "emb_w": emb_w.astype(mm),           # (V, E)
        "wih_cat": w_ih.T.astype(mm),        # (E, 3H) lanes = r|z|n
        "whh_cat": w_hh.T.astype(mm),        # (H, 3H)
        "b_i": b_i,                          # (1, 3H)
        "b_hn": b_hh[2 * H:3 * H].reshape(1, H).astype(jnp.float32),
        "wfc_t": wfc_t,                      # (H, Vp)
        "bfc": bfc,                          # (1, Vp)
    }


# ----------------------------------------------------------------------------
# Wrapper: Decoder.forward(y, h)
# ----------------------------------------------------------------------------
def decoder_forward(y, h, prep):
    """y: (B, T) int32 tokens;  h: (1, B, H) f32;  returns (B, T, V) f32 logits."""
    emb_w = prep["emb_w"]
    V, E = emb_w.shape
    H = prep["whh_cat"].shape[0]
    B, T = y.shape
    Bp = max(8, -(-B // 8) * 8)              # pad batch to full sublanes

    # --- glue: embedding gather (time-major, batch padded with token 0) ---
    # TODO(synk): fuse the gather into phase 1 via PrefetchScalarGridSpec +
    # pl.Element row blocks to skip one HBM round trip of the (T*Bp, E) slab.
    y_tm = jnp.transpose(y)                                   # (T, B)
    if Bp != B:
        y_tm = jnp.pad(y_tm, ((0, 0), (0, Bp - B)))           # pad id 0 -> zero row
    x_flat = jnp.take(emb_w, y_tm.reshape(T * Bp), axis=0)    # (T*Bp, E) mm dtype

    h0 = h[0].astype(jnp.float32)                             # (B, H)
    if Bp != B:
        h0 = jnp.pad(h0, ((0, Bp - B), (0, 0)))

    # --- phase 1: sequential GRU recurrence (T-chunked, pipelined grid) ---
    hs_flat = _gru(x_flat, h0, prep["wih_cat"], prep["whh_cat"],
                   prep["b_i"], prep["b_hn"], T, Bp)          # (T*Bp, H) f32

    # Small (H-wide) re-layout to batch-major so the projection writes the
    # final lane-dense (B*T, V) slab directly (no transpose of the logits).
    # TODO(synk): fold this re-layout into the projection's lhs BlockSpec
    # (grid over (t-block, b, V-tile)) so it becomes free DMA addressing.
    hs_bm = (hs_flat.reshape(T, Bp, H)[:, :B]
             .transpose(1, 0, 2).reshape(B * T, H)).astype(MATMUL_DTYPE)

    logits = _project(hs_bm, prep["wfc_t"], prep["bfc"], V)   # (B*T, V)
    return logits.reshape(B, T, V)


# ----------------------------------------------------------------------------
# Pure-JAX reference (PyTorch GRU semantics) for the correctness check.
# ----------------------------------------------------------------------------
def decoder_forward_ref(y, h, params):
    emb_w = params["emb_w"]
    w_ih, w_hh = params["w_ih"], params["w_hh"]
    b_ih, b_hh = params["b_ih"], params["b_hh"]
    w_fc, b_fc = params["w_fc"], params["b_fc"]
    H = w_hh.shape[1]

    x = jnp.take(emb_w, y, axis=0)               # (B, T, E)
    h_t = h[0]

    def step(h_prev, x_t):
        gi = x_t @ w_ih.T + b_ih
        gh = h_prev @ w_hh.T + b_hh
        r = jax.nn.sigmoid(gi[:, :H] + gh[:, :H])
        z = jax.nn.sigmoid(gi[:, H:2 * H] + gh[:, H:2 * H])
        n = jnp.tanh(gi[:, 2 * H:] + r * gh[:, 2 * H:])
        h_new = (1.0 - z) * n + z * h_prev
        return h_new, h_new

    _, hs = jax.lax.scan(step, h_t, jnp.transpose(x, (1, 0, 2)))   # (T, B, H)
    out = jnp.einsum("tbh,vh->tbv", hs, w_fc) + b_fc
    return jnp.transpose(out, (1, 0, 2))


# ----------------------------------------------------------------------------
# Deterministic parameter construction (PyTorch layouts).
# ----------------------------------------------------------------------------
def make_params(key, vocab_size, emb, hid):
    keys = jax.random.split(key, 7)
    scale = 0.1
    emb_w = scale * jax.random.normal(keys[0], (vocab_size, emb), jnp.float32)
    emb_w = emb_w.at[0].set(0.0)                 # padding_idx=0
    w_ih = scale * jax.random.normal(keys[1], (3 * hid, emb), jnp.float32)
    w_hh = scale * jax.random.normal(keys[2], (3 * hid, hid), jnp.float32)
    b_ih = scale * jax.random.normal(keys[3], (3 * hid,), jnp.float32)
    b_hh = scale * jax.random.normal(keys[4], (3 * hid,), jnp.float32)
    w_fc = scale * jax.random.normal(keys[5], (vocab_size, hid), jnp.float32)
    b_fc = scale * jax.random.normal(keys[6], (vocab_size,), jnp.float32)
    return {"emb_w": emb_w, "w_ih": w_ih, "w_hh": w_hh,
            "b_ih": b_ih, "b_hh": b_hh, "w_fc": w_fc, "b_fc": b_fc}


if __name__ == "__main__":
    B, T = 2, 8
    VOCAB, EMB, HID = 64, 32, 32

    key = jax.random.PRNGKey(0)
    k_params, k_tokens, k_h = jax.random.split(key, 3)

    params = make_params(k_params, VOCAB, EMB, HID)
    prep = prepare_params(params)                 # one-time weight prep
    y = jax.random.randint(k_tokens, (B, T), 0, VOCAB, dtype=jnp.int32)
    h = 0.1 * jax.random.normal(k_h, (1, B, HID), jnp.float32)

    fwd = jax.jit(decoder_forward)
    out = jax.block_until_ready(fwd(y, h, prep))
    ref = jax.block_until_ready(decoder_forward_ref(y, h, params))

    assert out.shape == (B, T, VOCAB), out.shape
    tol = 5e-2 if MATMUL_DTYPE == jnp.bfloat16 else 1e-4
    assert jnp.allclose(out, ref, atol=tol, rtol=tol), (
        float(jnp.max(jnp.abs(out - ref))))

    print("KERNEL_OK")
</pallas_src>

<mosaic_0001>
module attributes {stable_mosaic.version = 11 : i64} {
  func.func @_gru_recurrence_kernel(%arg0: i32, %arg1: memref<64x32xbf16, #tpu.memory_space<vmem>>, %arg2: memref<8x32xf32, #tpu.memory_space<vmem>>, %arg3: memref<32x96xbf16, #tpu.memory_space<vmem>>, %arg4: memref<32x96xbf16, #tpu.memory_space<vmem>>, %arg5: memref<1x96xf32, #tpu.memory_space<vmem>>, %arg6: memref<1x32xf32, #tpu.memory_space<vmem>>, %arg7: memref<64x32xf32, #tpu.memory_space<vmem>>, %arg8: memref<8x32xf32, #tpu.memory_space<vmem>>, %arg9: memref<64x96xf32, #tpu.memory_space<vmem>>) attributes {dimension_semantics = [#tpu.dimension_semantics<arbitrary>], iteration_bounds = array<i64: 1>, scalar_prefetch = 0 : i64, scratch_operands = 2 : i64, tpu.core_type = #tpu.core_type<tc>, window_params = [{transform_indices = @transform_0, window_bounds = array<i64: 64, 32>}, {pipeline_mode = #tpu.pipeline_mode<synchronous>, transform_indices = @transform_1, window_bounds = array<i64: 8, 32>}, {pipeline_mode = #tpu.pipeline_mode<synchronous>, transform_indices = @transform_2, window_bounds = array<i64: 32, 96>}, {pipeline_mode = #tpu.pipeline_mode<synchronous>, transform_indices = @transform_3, window_bounds = array<i64: 32, 96>}, {pipeline_mode = #tpu.pipeline_mode<synchronous>, transform_indices = @transform_4, window_bounds = array<i64: 1, 96>}, {pipeline_mode = #tpu.pipeline_mode<synchronous>, transform_indices = @transform_5, window_bounds = array<i64: 1, 32>}, {transform_indices = @transform_6, window_bounds = array<i64: 64, 32>}]} {
    %c0_i32 = arith.constant 0 : i32
    %0 = arith.cmpi eq, %arg0, %c0_i32 : i32
    %1 = arith.extui %0 : i1 to i32
    %c0_i32_0 = arith.constant 0 : i32
    %2 = arith.cmpi ne, %1, %c0_i32_0 : i32
    scf.if %2 {
      %c0_115 = arith.constant 0 : index
      %c0_116 = arith.constant 0 : index
      %317 = vector.load %arg2[%c0_115, %c0_116] : memref<8x32xf32, #tpu.memory_space<vmem>>, vector<8x32xf32>
      %c0_117 = arith.constant 0 : index
      %c0_118 = arith.constant 0 : index
      %318 = vector.load %arg8[%c0_117, %c0_118] : memref<8x32xf32, #tpu.memory_space<vmem>>, vector<8x32xf32>
      tpu.vector_store %arg8[%c0_117, %c0_118], %317 {strides = array<i32>} : memref<8x32xf32, #tpu.memory_space<vmem>>, vector<8x32xf32>,
    } else {
    }
    %c0 = arith.constant 0 : index
    %c0_1 = arith.constant 0 : index
    %3 = vector.load %arg1[%c0, %c0_1] : memref<64x32xbf16, #tpu.memory_space<vmem>>, vector<64x32xbf16>
    %c0_2 = arith.constant 0 : index
    %c0_3 = arith.constant 0 : index
    %4 = vector.load %arg3[%c0_2, %c0_3] : memref<32x96xbf16, #tpu.memory_space<vmem>>, vector<32x96xbf16>
    %cst = arith.constant dense<0.000000e+00> : vector<64x96xf32>
    %5 = tpu.matmul %3, %4, %cst {dimension_numbers = #tpu.dot_dimension_numbers<[1], [0], [0], [1], [0, 0, 1, 1], [], []>} : vector<64x32xbf16>, vector<32x96xbf16>, vector<64x96xf32> -> vector<64x96xf32>
    %c0_4 = arith.constant 0 : index
    %c0_5 = arith.constant 0 : index
    %6 = vector.load %arg5[%c0_4, %c0_5] : memref<1x96xf32, #tpu.memory_space<vmem>>, vector<1x96xf32>
    %7 = vector.broadcast %6 : vector<1x96xf32> to vector<64x96xf32>
    %8 = arith.addf %5, %7 : vector<64x96xf32>
    %c0_6 = arith.constant 0 : index
    %c0_7 = arith.constant 0 : index
    %9 = vector.load %arg9[%c0_6, %c0_7] : memref<64x96xf32, #tpu.memory_space<vmem>>, vector<64x96xf32>
    tpu.vector_store %arg9[%c0_6, %c0_7], %8 {strides = array<i32>} : memref<64x96xf32, #tpu.memory_space<vmem>>, vector<64x96xf32>,
    %c0_8 = arith.constant 0 : index
    %c0_9 = arith.constant 0 : index
    %10 = vector.load %arg6[%c0_8, %c0_9] : memref<1x32xf32, #tpu.memory_space<vmem>>, vector<1x32xf32>
    %11 = vector.shape_cast %10 : vector<1x32xf32> to vector<1x32xf32>
    %12 = vector.broadcast %11 : vector<1x32xf32> to vector<8x32xf32>
    %c0_i32_10 = arith.constant 0 : i32
    %c8_i32 = arith.constant 8 : i32
    %13 = arith.muli %c0_i32_10, %c8_i32 : i32
    %14 = tpu.assume_multiple %13, 8 : i32
    %c0_11 = arith.constant 0 : index
    %c0_12 = arith.constant 0 : index
    %15 = vector.load %arg8[%c0_11, %c0_12] : memref<8x32xf32, #tpu.memory_space<vmem>>, vector<8x32xf32>
    %16 = arith.truncf %15 : vector<8x32xf32> to vector<8x32xbf16>
    %c0_13 = arith.constant 0 : index
    %c0_14 = arith.constant 0 : index
    %17 = vector.load %arg4[%c0_13, %c0_14] : memref<32x96xbf16, #tpu.memory_space<vmem>>, vector<32x96xbf16>
    %cst_15 = arith.constant dense<0.000000e+00> : vector<8x96xf32>
    %18 = tpu.matmul %16, %17, %cst_15 {dimension_numbers = #tpu.dot_dimension_numbers<[1], [0], [0], [1], [0, 0, 1, 1], [], []>} : vector<8x32xbf16>, vector<32x96xbf16>, vector<8x96xf32> -> vector<8x96xf32>
    %19 = arith.index_cast %14 : i32 to index
    %c0_16 = arith.constant 0 : index
    %20 = vector.load %arg9[%19, %c0_16] : memref<64x96xf32, #tpu.memory_space<vmem>>, vector<8x96xf32>
    %21 = vector.extract_strided_slice %20 {offsets = [0, 0], sizes = [8, 32], strides = [1, 1]} : vector<8x96xf32> to vector<8x32xf32>
    %22 = vector.extract_strided_slice %18 {offsets = [0, 0], sizes = [8, 32], strides = [1, 1]} : vector<8x96xf32> to vector<8x32xf32>
    %23 = arith.addf %21, %22 : vector<8x32xf32>
    %24 = arith.negf %23 : vector<8x32xf32>
    %25 = math.exp %24 : vector<8x32xf32>
    %cst_17 = arith.constant 1.000000e+00 : f32
    %26 = vector.broadcast %cst_17 : f32 to vector<8x32xf32>
    %27 = arith.addf %26, %25 : vector<8x32xf32>
    %28 = arith.divf %26, %27 : vector<8x32xf32>
    %29 = vector.extract_strided_slice %20 {offsets = [0, 32], sizes = [8, 32], strides = [1, 1]} : vector<8x96xf32> to vector<8x32xf32>
    %30 = vector.extract_strided_slice %18 {offsets = [0, 32], sizes = [8, 32], strides = [1, 1]} : vector<8x96xf32> to vector<8x32xf32>
    %31 = arith.addf %29, %30 : vector<8x32xf32>
    %32 = arith.negf %31 : vector<8x32xf32>
    %33 = math.exp %32 : vector<8x32xf32>
    %cst_18 = arith.constant 1.000000e+00 : f32
    %34 = vector.broadcast %cst_18 : f32 to vector<8x32xf32>
    %35 = arith.addf %34, %33 : vector<8x32xf32>
    %36 = arith.divf %34, %35 : vector<8x32xf32>
    %37 = vector.extract_strided_slice %20 {offsets = [0, 64], sizes = [8, 32], strides = [1, 1]} : vector<8x96xf32> to vector<8x32xf32>
    %38 = vector.extract_strided_slice %18 {offsets = [0, 64], sizes = [8, 32], strides = [1, 1]} : vector<8x96xf32> to vector<8x32xf32>
    %39 = arith.addf %38, %12 : vector<8x32xf32>
    %40 = arith.mulf %28, %39 : vector<8x32xf32>
    %41 = arith.addf %37, %40 : vector<8x32xf32>
    %42 = math.tanh %41 : vector<8x32xf32>
    %cst_19 = arith.constant 1.000000e+00 : f32
    %43 = vector.broadcast %cst_19 : f32 to vector<8x32xf32>
    %44 = arith.subf %43, %36 : vector<8x32xf32>
    %45 = arith.mulf %44, %42 : vector<8x32xf32>
    %46 = arith.mulf %36, %15 : vector<8x32xf32>
    %47 = arith.addf %45, %46 : vector<8x32xf32>
    %c0_20 = arith.constant 0 : index
    %c0_21 = arith.constant 0 : index
    %48 = vector.load %arg8[%c0_20, %c0_21] : memref<8x32xf32, #tpu.memory_space<vmem>>, vector<8x32xf32>
    tpu.vector_store %arg8[%c0_20, %c0_21], %47 {strides = array<i32>} : memref<8x32xf32, #tpu.memory_space<vmem>>, vector<8x32xf32>,
    %49 = arith.index_cast %14 : i32 to index
    %c0_22 = arith.constant 0 : index
    %50 = vector.load %arg7[%49, %c0_22] : memref<64x32xf32, #tpu.memory_space<vmem>>, vector<8x32xf32>
    tpu.vector_store %arg7[%49, %c0_22], %47 {strides = array<i32>} : memref<64x32xf32, #tpu.memory_space<vmem>>, vector<8x32xf32>,
    %c1_i32 = arith.constant 1 : i32
    %c8_i32_23 = arith.constant 8 : i32
    %51 = arith.muli %c1_i32, %c8_i32_23 : i32
    %52 = tpu.assume_multiple %51, 8 : i32
    %c0_24 = arith.constant 0 : index
    %c0_25 = arith.constant 0 : index
    %53 = vector.load %arg8[%c0_24, %c0_25] : memref<8x32xf32, #tpu.memory_space<vmem>>, vector<8x32xf32>
    %54 = arith.truncf %53 : vector<8x32xf32> to vector<8x32xbf16>
    %c0_26 = arith.constant 0 : index
    %c0_27 = arith.constant 0 : index
    %55 = vector.load %arg4[%c0_26, %c0_27] : memref<32x96xbf16, #tpu.memory_space<vmem>>, vector<32x96xbf16>
    %cst_28 = arith.constant dense<0.000000e+00> : vector<8x96xf32>
    %56 = tpu.matmul %54, %55, %cst_28 {dimension_numbers = #tpu.dot_dimension_numbers<[1], [0], [0], [1], [0, 0, 1, 1], [], []>} : vector<8x32xbf16>, vector<32x96xbf16>, vector<8x96xf32> -> vector<8x96xf32>
    %57 = arith.index_cast %52 : i32 to index
    %c0_29 = arith.constant 0 : index
    %58 = vector.load %arg9[%57, %c0_29] : memref<64x96xf32, #tpu.memory_space<vmem>>, vector<8x96xf32>
    %59 = vector.extract_strided_slice %58 {offsets = [0, 0], sizes = [8, 32], strides = [1, 1]} : vector<8x96xf32> to vector<8x32xf32>
    %60 = vector.extract_strided_slice %56 {offsets = [0, 0], sizes = [8, 32], strides = [1, 1]} : vector<8x96xf32> to vector<8x32xf32>
    %61 = arith.addf %59, %60 : vector<8x32xf32>
    %62 = arith.negf %61 : vector<8x32xf32>
    %63 = math.exp %62 : vector<8x32xf32>
    %cst_30 = arith.constant 1.000000e+00 : f32
    %64 = vector.broadcast %cst_30 : f32 to vector<8x32xf32>
    %65 = arith.addf %64, %63 : vector<8x32xf32>
    %66 = arith.divf %64, %65 : vector<8x32xf32>
    %67 = vector.extract_strided_slice %58 {offsets = [0, 32], sizes = [8, 32], strides = [1, 1]} : vector<8x96xf32> to vector<8x32xf32>
    %68 = vector.extract_strided_slice %56 {offsets = [0, 32], sizes = [8, 32], strides = [1, 1]} : vector<8x96xf32> to vector<8x32xf32>
    %69 = arith.addf %67, %68 : vector<8x32xf32>
    %70 = arith.negf %69 : vector<8x32xf32>
    %71 = math.exp %70 : vector<8x32xf32>
    %cst_31 = arith.constant 1.000000e+00 : f32
    %72 = vector.broadcast %cst_31 : f32 to vector<8x32xf32>
    %73 = arith.addf %72, %71 : vector<8x32xf32>
    %74 = arith.divf %72, %73 : vector<8x32xf32>
    %75 = vector.extract_strided_slice %58 {offsets = [0, 64], sizes = [8, 32], strides = [1, 1]} : vector<8x96xf32> to vector<8x32xf32>
    %76 = vector.extract_strided_slice %56 {offsets = [0, 64], sizes = [8, 32], strides = [1, 1]} : vector<8x96xf32> to vector<8x32xf32>
    %77 = arith.addf %76, %12 : vector<8x32xf32>
    %78 = arith.mulf %66, %77 : vector<8x32xf32>
    %79 = arith.addf %75, %78 : vector<8x32xf32>
    %80 = math.tanh %79 : vector<8x32xf32>
    %cst_32 = arith.constant 1.000000e+00 : f32
    %81 = vector.broadcast %cst_32 : f32 to vector<8x32xf32>
    %82 = arith.subf %81, %74 : vector<8x32xf32>
    %83 = arith.mulf %82, %80 : vector<8x32xf32>
    %84 = arith.mulf %74, %53 : vector<8x32xf32>
    %85 = arith.addf %83, %84 : vector<8x32xf32>
    %c0_33 = arith.constant 0 : index
    %c0_34 = arith.constant 0 : index
    %86 = vector.load %arg8[%c0_33, %c0_34] : memref<8x32xf32, #tpu.memory_space<vmem>>, vector<8x32xf32>
    tpu.vector_store %arg8[%c0_33, %c0_34], %85 {strides = array<i32>} : memref<8x32xf32, #tpu.memory_space<vmem>>, vector<8x32xf32>,
    %87 = arith.index_cast %52 : i32 to index
    %c0_35 = arith.constant 0 : index
    %88 = vector.load %arg7[%87, %c0_35] : memref<64x32xf32, #tpu.memory_space<vmem>>, vector<8x32xf32>
    tpu.vector_store %arg7[%87, %c0_35], %85 {strides = array<i32>} : memref<64x32xf32, #tpu.memory_space<vmem>>, vector<8x32xf32>,
    %c2_i32 = arith.constant 2 : i32
    %c8_i32_36 = arith.constant 8 : i32
    %89 = arith.muli %c2_i32, %c8_i32_36 : i32
    %90 = tpu.assume_multiple %89, 8 : i32
    %c0_37 = arith.constant 0 : index
    %c0_38 = arith.constant 0 : index
    %91 = vector.load %arg8[%c0_37, %c0_38] : memref<8x32xf32, #tpu.memory_space<vmem>>, vector<8x32xf32>
    %92 = arith.truncf %91 : vector<8x32xf32> to vector<8x32xbf16>
    %c0_39 = arith.constant 0 : index
    %c0_40 = arith.constant 0 : index
    %93 = vector.load %arg4[%c0_39, %c0_40] : memref<32x96xbf16, #tpu.memory_space<vmem>>, vector<32x96xbf16>
    %cst_41 = arith.constant dense<0.000000e+00> : vector<8x96xf32>
    %94 = tpu.matmul %92, %93, %cst_41 {dimension_numbers = #tpu.dot_dimension_numbers<[1], [0], [0], [1], [0, 0, 1, 1], [], []>} : vector<8x32xbf16>, vector<32x96xbf16>, vector<8x96xf32> -> vector<8x96xf32>
    %95 = arith.index_cast %90 : i32 to index
    %c0_42 = arith.constant 0 : index
    %96 = vector.load %arg9[%95, %c0_42] : memref<64x96xf32, #tpu.memory_space<vmem>>, vector<8x96xf32>
    %97 = vector.extract_strided_slice %96 {offsets = [0, 0], sizes = [8, 32], strides = [1, 1]} : vector<8x96xf32> to vector<8x32xf32>
    %98 = vector.extract_strided_slice %94 {offsets = [0, 0], sizes = [8, 32], strides = [1, 1]} : vector<8x96xf32> to vector<8x32xf32>
    %99 = arith.addf %97, %98 : vector<8x32xf32>
    %100 = arith.negf %99 : vector<8x32xf32>
    %101 = math.exp %100 : vector<8x32xf32>
    %cst_43 = arith.constant 1.000000e+00 : f32
    %102 = vector.broadcast %cst_43 : f32 to vector<8x32xf32>
    %103 = arith.addf %102, %101 : vector<8x32xf32>
    %104 = arith.divf %102, %103 : vector<8x32xf32>
    %105 = vector.extract_strided_slice %96 {offsets = [0, 32], sizes = [8, 32], strides = [1, 1]} : vector<8x96xf32> to vector<8x32xf32>
    %106 = vector.extract_strided_slice %94 {offsets = [0, 32], sizes = [8, 32], strides = [1, 1]} : vector<8x96xf32> to vector<8x32xf32>
    %107 = arith.addf %105, %106 : vector<8x32xf32>
    %108 = arith.negf %107 : vector<8x32xf32>
    %109 = math.exp %108 : vector<8x32xf32>
    %cst_44 = arith.constant 1.000000e+00 : f32
    %110 = vector.broadcast %cst_44 : f32 to vector<8x32xf32>
    %111 = arith.addf %110, %109 : vector<8x32xf32>
    %112 = arith.divf %110, %111 : vector<8x32xf32>
    %113 = vector.extract_strided_slice %96 {offsets = [0, 64], sizes = [8, 32], strides = [1, 1]} : vector<8x96xf32> to vector<8x32xf32>
    %114 = vector.extract_strided_slice %94 {offsets = [0, 64], sizes = [8, 32], strides = [1, 1]} : vector<8x96xf32> to vector<8x32xf32>
    %115 = arith.addf %114, %12 : vector<8x32xf32>
    %116 = arith.mulf %104, %115 : vector<8x32xf32>
    %117 = arith.addf %113, %116 : vector<8x32xf32>
    %118 = math.tanh %117 : vector<8x32xf32>
    %cst_45 = arith.constant 1.000000e+00 : f32
    %119 = vector.broadcast %cst_45 : f32 to vector<8x32xf32>
    %120 = arith.subf %119, %112 : vector<8x32xf32>
    %121 = arith.mulf %120, %118 : vector<8x32xf32>
    %122 = arith.mulf %112, %91 : vector<8x32xf32>
    %123 = arith.addf %121, %122 : vector<8x32xf32>
    %c0_46 = arith.constant 0 : index
    %c0_47 = arith.constant 0 : index
    %124 = vector.load %arg8[%c0_46, %c0_47] : memref<8x32xf32, #tpu.memory_space<vmem>>, vector<8x32xf32>
    tpu.vector_store %arg8[%c0_46, %c0_47], %123 {strides = array<i32>} : memref<8x32xf32, #tpu.memory_space<vmem>>, vector<8x32xf32>,
    %125 = arith.index_cast %90 : i32 to index
    %c0_48 = arith.constant 0 : index
    %126 = vector.load %arg7[%125, %c0_48] : memref<64x32xf32, #tpu.memory_space<vmem>>, vector<8x32xf32>
    tpu.vector_store %arg7[%125, %c0_48], %123 {strides = array<i32>} : memref<64x32xf32, #tpu.memory_space<vmem>>, vector<8x32xf32>,
    %c3_i32 = arith.constant 3 : i32
    %c8_i32_49 = arith.constant 8 : i32
    %127 = arith.muli %c3_i32, %c8_i32_49 : i32
    %128 = tpu.assume_multiple %127, 8 : i32
    %c0_50 = arith.constant 0 : index
    %c0_51 = arith.constant 0 : index
    %129 = vector.load %arg8[%c0_50, %c0_51] : memref<8x32xf32, #tpu.memory_space<vmem>>, vector<8x32xf32>
    %130 = arith.truncf %129 : vector<8x32xf32> to vector<8x32xbf16>
    %c0_52 = arith.constant 0 : index
    %c0_53 = arith.constant 0 : index
    %131 = vector.load %arg4[%c0_52, %c0_53] : memref<32x96xbf16, #tpu.memory_space<vmem>>, vector<32x96xbf16>
    %cst_54 = arith.constant dense<0.000000e+00> : vector<8x96xf32>
    %132 = tpu.matmul %130, %131, %cst_54 {dimension_numbers = #tpu.dot_dimension_numbers<[1], [0], [0], [1], [0, 0, 1, 1], [], []>} : vector<8x32xbf16>, vector<32x96xbf16>, vector<8x96xf32> -> vector<8x96xf32>
    %133 = arith.index_cast %128 : i32 to index
    %c0_55 = arith.constant 0 : index
    %134 = vector.load %arg9[%133, %c0_55] : memref<64x96xf32, #tpu.memory_space<vmem>>, vector<8x96xf32>
    %135 = vector.extract_strided_slice %134 {offsets = [0, 0], sizes = [8, 32], strides = [1, 1]} : vector<8x96xf32> to vector<8x32xf32>
    %136 = vector.extract_strided_slice %132 {offsets = [0, 0], sizes = [8, 32], strides = [1, 1]} : vector<8x96xf32> to vector<8x32xf32>
    %137 = arith.addf %135, %136 : vector<8x32xf32>
    %138 = arith.negf %137 : vector<8x32xf32>
    %139 = math.exp %138 : vector<8x32xf32>
    %cst_56 = arith.constant 1.000000e+00 : f32
    %140 = vector.broadcast %cst_56 : f32 to vector<8x32xf32>
    %141 = arith.addf %140, %139 : vector<8x32xf32>
    %142 = arith.divf %140, %141 : vector<8x32xf32>
    %143 = vector.extract_strided_slice %134 {offsets = [0, 32], sizes = [8, 32], strides = [1, 1]} : vector<8x96xf32> to vector<8x32xf32>
    %144 = vector.extract_strided_slice %132 {offsets = [0, 32], sizes = [8, 32], strides = [1, 1]} : vector<8x96xf32> to vector<8x32xf32>
    %145 = arith.addf %143, %144 : vector<8x32xf32>
    %146 = arith.negf %145 : vector<8x32xf32>
    %147 = math.exp %146 : vector<8x32xf32>
    %cst_57 = arith.constant 1.000000e+00 : f32
    %148 = vector.broadcast %cst_57 : f32 to vector<8x32xf32>
    %149 = arith.addf %148, %147 : vector<8x32xf32>
    %150 = arith.divf %148, %149 : vector<8x32xf32>
    %151 = vector.extract_strided_slice %134 {offsets = [0, 64], sizes = [8, 32], strides = [1, 1]} : vector<8x96xf32> to vector<8x32xf32>
    %152 = vector.extract_strided_slice %132 {offsets = [0, 64], sizes = [8, 32], strides = [1, 1]} : vector<8x96xf32> to vector<8x32xf32>
    %153 = arith.addf %152, %12 : vector<8x32xf32>
    %154 = arith.mulf %142, %153 : vector<8x32xf32>
    %155 = arith.addf %151, %154 : vector<8x32xf32>
    %156 = math.tanh %155 : vector<8x32xf32>
    %cst_58 = arith.constant 1.000000e+00 : f32
    %157 = vector.broadcast %cst_58 : f32 to vector<8x32xf32>
    %158 = arith.subf %157, %150 : vector<8x32xf32>
    %159 = arith.mulf %158, %156 : vector<8x32xf32>
    %160 = arith.mulf %150, %129 : vector<8x32xf32>
    %161 = arith.addf %159, %160 : vector<8x32xf32>
    %c0_59 = arith.constant 0 : index
    %c0_60 = arith.constant 0 : index
    %162 = vector.load %arg8[%c0_59, %c0_60] : memref<8x32xf32, #tpu.memory_space<vmem>>, vector<8x32xf32>
    tpu.vector_store %arg8[%c0_59, %c0_60], %161 {strides = array<i32>} : memref<8x32xf32, #tpu.memory_space<vmem>>, vector<8x32xf32>,
    %163 = arith.index_cast %128 : i32 to index
    %c0_61 = arith.constant 0 : index
    %164 = vector.load %arg7[%163, %c0_61] : memref<64x32xf32, #tpu.memory_space<vmem>>, vector<8x32xf32>
    tpu.vector_store %arg7[%163, %c0_61], %161 {strides = array<i32>} : memref<64x32xf32, #tpu.memory_space<vmem>>, vector<8x32xf32>,
    %c4_i32 = arith.constant 4 : i32
    %c8_i32_62 = arith.constant 8 : i32
    %165 = arith.muli %c4_i32, %c8_i32_62 : i32
    %166 = tpu.assume_multiple %165, 8 : i32
    %c0_63 = arith.constant 0 : index
    %c0_64 = arith.constant 0 : index
    %167 = vector.load %arg8[%c0_63, %c0_64] : memref<8x32xf32, #tpu.memory_space<vmem>>, vector<8x32xf32>
    %168 = arith.truncf %167 : vector<8x32xf32> to vector<8x32xbf16>
    %c0_65 = arith.constant 0 : index
    %c0_66 = arith.constant 0 : index
    %169 = vector.load %arg4[%c0_65, %c0_66] : memref<32x96xbf16, #tpu.memory_space<vmem>>, vector<32x96xbf16>
    %cst_67 = arith.constant dense<0.000000e+00> : vector<8x96xf32>
    %170 = tpu.matmul %168, %169, %cst_67 {dimension_numbers = #tpu.dot_dimension_numbers<[1], [0], [0], [1], [0, 0, 1, 1], [], []>} : vector<8x32xbf16>, vector<32x96xbf16>, vector<8x96xf32> -> vector<8x96xf32>
    %171 = arith.index_cast %166 : i32 to index
    %c0_68 = arith.constant 0 : index
    %172 = vector.load %arg9[%171, %c0_68] : memref<64x96xf32, #tpu.memory_space<vmem>>, vector<8x96xf32>
    %173 = vector.extract_strided_slice %172 {offsets = [0, 0], sizes = [8, 32], strides = [1, 1]} : vector<8x96xf32> to vector<8x32xf32>
    %174 = vector.extract_strided_slice %170 {offsets = [0, 0], sizes = [8, 32], strides = [1, 1]} : vector<8x96xf32> to vector<8x32xf32>
    %175 = arith.addf %173, %174 : vector<8x32xf32>
    %176 = arith.negf %175 : vector<8x32xf32>
    %177 = math.exp %176 : vector<8x32xf32>
    %cst_69 = arith.constant 1.000000e+00 : f32
    %178 = vector.broadcast %cst_69 : f32 to vector<8x32xf32>
    %179 = arith.addf %178, %177 : vector<8x32xf32>
    %180 = arith.divf %178, %179 : vector<8x32xf32>
    %181 = vector.extract_strided_slice %172 {offsets = [0, 32], sizes = [8, 32], strides = [1, 1]} : vector<8x96xf32> to vector<8x32xf32>
    %182 = vector.extract_strided_slice %170 {offsets = [0, 32], sizes = [8, 32], strides = [1, 1]} : vector<8x96xf32> to vector<8x32xf32>
    %183 = arith.addf %181, %182 : vector<8x32xf32>
    %184 = arith.negf %183 : vector<8x32xf32>
    %185 = math.exp %184 : vector<8x32xf32>
    %cst_70 = arith.constant 1.000000e+00 : f32
    %186 = vector.broadcast %cst_70 : f32 to vector<8x32xf32>
    %187 = arith.addf %186, %185 : vector<8x32xf32>
    %188 = arith.divf %186, %187 : vector<8x32xf32>
    %189 = vector.extract_strided_slice %172 {offsets = [0, 64], sizes = [8, 32], strides = [1, 1]} : vector<8x96xf32> to vector<8x32xf32>
    %190 = vector.extract_strided_slice %170 {offsets = [0, 64], sizes = [8, 32], strides = [1, 1]} : vector<8x96xf32> to vector<8x32xf32>
    %191 = arith.addf %190, %12 : vector<8x32xf32>
    %192 = arith.mulf %180, %191 : vector<8x32xf32>
    %193 = arith.addf %189, %192 : vector<8x32xf32>
    %194 = math.tanh %193 : vector<8x32xf32>
    %cst_71 = arith.constant 1.000000e+00 : f32
    %195 = vector.broadcast %cst_71 : f32 to vector<8x32xf32>
    %196 = arith.subf %195, %188 : vector<8x32xf32>
    %197 = arith.mulf %196, %194 : vector<8x32xf32>
    %198 = arith.mulf %188, %167 : vector<8x32xf32>
    %199 = arith.addf %197, %198 : vector<8x32xf32>
    %c0_72 = arith.constant 0 : index
    %c0_73 = arith.constant 0 : index
    %200 = vector.load %arg8[%c0_72, %c0_73] : memref<8x32xf32, #tpu.memory_space<vmem>>, vector<8x32xf32>
    tpu.vector_store %arg8[%c0_72, %c0_73], %199 {strides = array<i32>} : memref<8x32xf32, #tpu.memory_space<vmem>>, vector<8x32xf32>,
    %201 = arith.index_cast %166 : i32 to index
    %c0_74 = arith.constant 0 : index
    %202 = vector.load %arg7[%201, %c0_74] : memref<64x32xf32, #tpu.memory_space<vmem>>, vector<8x32xf32>
    tpu.vector_store %arg7[%201, %c0_74], %199 {strides = array<i32>} : memref<64x32xf32, #tpu.memory_space<vmem>>, vector<8x32xf32>,
    %c5_i32 = arith.constant 5 : i32
    %c8_i32_75 = arith.constant 8 : i32
    %203 = arith.muli %c5_i32, %c8_i32_75 : i32
    %204 = tpu.assume_multiple %203, 8 : i32
    %c0_76 = arith.constant 0 : index
    %c0_77 = arith.constant 0 : index
    %205 = vector.load %arg8[%c0_76, %c0_77] : memref<8x32xf32, #tpu.memory_space<vmem>>, vector<8x32xf32>
    %206 = arith.truncf %205 : vector<8x32xf32> to vector<8x32xbf16>
    %c0_78 = arith.constant 0 : index
    %c0_79 = arith.constant 0 : index
    %207 = vector.load %arg4[%c0_78, %c0_79] : memref<32x96xbf16, #tpu.memory_space<vmem>>, vector<32x96xbf16>
    %cst_80 = arith.constant dense<0.000000e+00> : vector<8x96xf32>
    %208 = tpu.matmul %206, %207, %cst_80 {dimension_numbers = #tpu.dot_dimension_numbers<[1], [0], [0], [1], [0, 0, 1, 1], [], []>} : vector<8x32xbf16>, vector<32x96xbf16>, vector<8x96xf32> -> vector<8x96xf32>
    %209 = arith.index_cast %204 : i32 to index
    %c0_81 = arith.constant 0 : index
    %210 = vector.load %arg9[%209, %c0_81] : memref<64x96xf32, #tpu.memory_space<vmem>>, vector<8x96xf32>
    %211 = vector.extract_strided_slice %210 {offsets = [0, 0], sizes = [8, 32], strides = [1, 1]} : vector<8x96xf32> to vector<8x32xf32>
    %212 = vector.extract_strided_slice %208 {offsets = [0, 0], sizes = [8, 32], strides = [1, 1]} : vector<8x96xf32> to vector<8x32xf32>
    %213 = arith.addf %211, %212 : vector<8x32xf32>
    %214 = arith.negf %213 : vector<8x32xf32>
    %215 = math.exp %214 : vector<8x32xf32>
    %cst_82 = arith.constant 1.000000e+00 : f32
    %216 = vector.broadcast %cst_82 : f32 to vector<8x32xf32>
    %217 = arith.addf %216, %215 : vector<8x32xf32>
    %218 = arith.divf %216, %217 : vector<8x32xf32>
    %219 = vector.extract_strided_slice %210 {offsets = [0, 32], sizes = [8, 32], strides = [1, 1]} : vector<8x96xf32> to vector<8x32xf32>
    %220 = vector.extract_strided_slice %208 {offsets = [0, 32], sizes = [8, 32], strides = [1, 1]} : vector<8x96xf32> to vector<8x32xf32>
    %221 = arith.addf %219, %220 : vector<8x32xf32>
    %222 = arith.negf %221 : vector<8x32xf32>
    %223 = math.exp %222 : vector<8x32xf32>
    %cst_83 = arith.constant 1.000000e+00 : f32
    %224 = vector.broadcast %cst_83 : f32 to vector<8x32xf32>
    %225 = arith.addf %224, %223 : vector<8x32xf32>
    %226 = arith.divf %224, %225 : vector<8x32xf32>
    %227 = vector.extract_strided_slice %210 {offsets = [0, 64], sizes = [8, 32], strides = [1, 1]} : vector<8x96xf32> to vector<8x32xf32>
    %228 = vector.extract_strided_slice %208 {offsets = [0, 64], sizes = [8, 32], strides = [1, 1]} : vector<8x96xf32> to vector<8x32xf32>
    %229 = arith.addf %228, %12 : vector<8x32xf32>
    %230 = arith.mulf %218, %229 : vector<8x32xf32>
    %231 = arith.addf %227, %230 : vector<8x32xf32>
    %232 = math.tanh %231 : vector<8x32xf32>
    %cst_84 = arith.constant 1.000000e+00 : f32
    %233 = vector.broadcast %cst_84 : f32 to vector<8x32xf32>
    %234 = arith.subf %233, %226 : vector<8x32xf32>
    %235 = arith.mulf %234, %232 : vector<8x32xf32>
    %236 = arith.mulf %226, %205 : vector<8x32xf32>
    %237 = arith.addf %235, %236 : vector<8x32xf32>
    %c0_85 = arith.constant 0 : index
    %c0_86 = arith.constant 0 : index
    %238 = vector.load %arg8[%c0_85, %c0_86] : memref<8x32xf32, #tpu.memory_space<vmem>>, vector<8x32xf32>
    tpu.vector_store %arg8[%c0_85, %c0_86], %237 {strides = array<i32>} : memref<8x32xf32, #tpu.memory_space<vmem>>, vector<8x32xf32>,
    %239 = arith.index_cast %204 : i32 to index
    %c0_87 = arith.constant 0 : index
    %240 = vector.load %arg7[%239, %c0_87] : memref<64x32xf32, #tpu.memory_space<vmem>>, vector<8x32xf32>
    tpu.vector_store %arg7[%239, %c0_87], %237 {strides = array<i32>} : memref<64x32xf32, #tpu.memory_space<vmem>>, vector<8x32xf32>,
    %c6_i32 = arith.constant 6 : i32
    %c8_i32_88 = arith.constant 8 : i32
    %241 = arith.muli %c6_i32, %c8_i32_88 : i32
    %242 = tpu.assume_multiple %241, 8 : i32
    %c0_89 = arith.constant 0 : index
    %c0_90 = arith.constant 0 : index
    %243 = vector.load %arg8[%c0_89, %c0_90] : memref<8x32xf32, #tpu.memory_space<vmem>>, vector<8x32xf32>
    %244 = arith.truncf %243 : vector<8x32xf32> to vector<8x32xbf16>
    %c0_91 = arith.constant 0 : index
    %c0_92 = arith.constant 0 : index
    %245 = vector.load %arg4[%c0_91, %c0_92] : memref<32x96xbf16, #tpu.memory_space<vmem>>, vector<32x96xbf16>
    %cst_93 = arith.constant dense<0.000000e+00> : vector<8x96xf32>
    %246 = tpu.matmul %244, %245, %cst_93 {dimension_numbers = #tpu.dot_dimension_numbers<[1], [0], [0], [1], [0, 0, 1, 1], [], []>} : vector<8x32xbf16>, vector<32x96xbf16>, vector<8x96xf32> -> vector<8x96xf32>
    %247 = arith.index_cast %242 : i32 to index
    %c0_94 = arith.constant 0 : index
    %248 = vector.load %arg9[%247, %c0_94] : memref<64x96xf32, #tpu.memory_space<vmem>>, vector<8x96xf32>
    %249 = vector.extract_strided_slice %248 {offsets = [0, 0], sizes = [8, 32], strides = [1, 1]} : vector<8x96xf32> to vector<8x32xf32>
    %250 = vector.extract_strided_slice %246 {offsets = [0, 0], sizes = [8, 32], strides = [1, 1]} : vector<8x96xf32> to vector<8x32xf32>
    %251 = arith.addf %249, %250 : vector<8x32xf32>
    %252 = arith.negf %251 : vector<8x32xf32>
    %253 = math.exp %252 : vector<8x32xf32>
    %cst_95 = arith.constant 1.000000e+00 : f32
    %254 = vector.broadcast %cst_95 : f32 to vector<8x32xf32>
    %255 = arith.addf %254, %253 : vector<8x32xf32>
    %256 = arith.divf %254, %255 : vector<8x32xf32>
    %257 = vector.extract_strided_slice %248 {offsets = [0, 32], sizes = [8, 32], strides = [1, 1]} : vector<8x96xf32> to vector<8x32xf32>
    %258 = vector.extract_strided_slice %246 {offsets = [0, 32], sizes = [8, 32], strides = [1, 1]} : vector<8x96xf32> to vector<8x32xf32>
    %259 = arith.addf %257, %258 : vector<8x32xf32>
    %260 = arith.negf %259 : vector<8x32xf32>
    %261 = math.exp %260 : vector<8x32xf32>
    %cst_96 = arith.constant 1.000000e+00 : f32
    %262 = vector.broadcast %cst_96 : f32 to vector<8x32xf32>
    %263 = arith.addf %262, %261 : vector<8x32xf32>
    %264 = arith.divf %262, %263 : vector<8x32xf32>
    %265 = vector.extract_strided_slice %248 {offsets = [0, 64], sizes = [8, 32], strides = [1, 1]} : vector<8x96xf32> to vector<8x32xf32>
    %266 = vector.extract_strided_slice %246 {offsets = [0, 64], sizes = [8, 32], strides = [1, 1]} : vector<8x96xf32> to vector<8x32xf32>
    %267 = arith.addf %266, %12 : vector<8x32xf32>
    %268 = arith.mulf %256, %267 : vector<8x32xf32>
    %269 = arith.addf %265, %268 : vector<8x32xf32>
    %270 = math.tanh %269 : vector<8x32xf32>
    %cst_97 = arith.constant 1.000000e+00 : f32
    %271 = vector.broadcast %cst_97 : f32 to vector<8x32xf32>
    %272 = arith.subf %271, %264 : vector<8x32xf32>
    %273 = arith.mulf %272, %270 : vector<8x32xf32>
    %274 = arith.mulf %264, %243 : vector<8x32xf32>
    %275 = arith.addf %273, %274 : vector<8x32xf32>
    %c0_98 = arith.constant 0 : index
    %c0_99 = arith.constant 0 : index
    %276 = vector.load %arg8[%c0_98, %c0_99] : memref<8x32xf32, #tpu.memory_space<vmem>>, vector<8x32xf32>
    tpu.vector_store %arg8[%c0_98, %c0_99], %275 {strides = array<i32>} : memref<8x32xf32, #tpu.memory_space<vmem>>, vector<8x32xf32>,
    %277 = arith.index_cast %242 : i32 to index
    %c0_100 = arith.constant 0 : index
    %278 = vector.load %arg7[%277, %c0_100] : memref<64x32xf32, #tpu.memory_space<vmem>>, vector<8x32xf32>
    tpu.vector_store %arg7[%277, %c0_100], %275 {strides = array<i32>} : memref<64x32xf32, #tpu.memory_space<vmem>>, vector<8x32xf32>,
    %c7_i32 = arith.constant 7 : i32
    %c8_i32_101 = arith.constant 8 : i32
    %279 = arith.muli %c7_i32, %c8_i32_101 : i32
    %280 = tpu.assume_multiple %279, 8 : i32
    %c0_102 = arith.constant 0 : index
    %c0_103 = arith.constant 0 : index
    %281 = vector.load %arg8[%c0_102, %c0_103] : memref<8x32xf32, #tpu.memory_space<vmem>>, vector<8x32xf32>
    %282 = arith.truncf %281 : vector<8x32xf32> to vector<8x32xbf16>
    %c0_104 = arith.constant 0 : index
    %c0_105 = arith.constant 0 : index
    %283 = vector.load %arg4[%c0_104, %c0_105] : memref<32x96xbf16, #tpu.memory_space<vmem>>, vector<32x96xbf16>
    %cst_106 = arith.constant dense<0.000000e+00> : vector<8x96xf32>
    %284 = tpu.matmul %282, %283, %cst_106 {dimension_numbers = #tpu.dot_dimension_numbers<[1], [0], [0], [1], [0, 0, 1, 1], [], []>} : vector<8x32xbf16>, vector<32x96xbf16>, vector<8x96xf32> -> vector<8x96xf32>
    %285 = arith.index_cast %280 : i32 to index
    %c0_107 = arith.constant 0 : index
    %286 = vector.load %arg9[%285, %c0_107] : memref<64x96xf32, #tpu.memory_space<vmem>>, vector<8x96xf32>
    %287 = vector.extract_strided_slice %286 {offsets = [0, 0], sizes = [8, 32], strides = [1, 1]} : vector<8x96xf32> to vector<8x32xf32>
    %288 = vector.extract_strided_slice %284 {offsets = [0, 0], sizes = [8, 32], strides = [1, 1]} : vector<8x96xf32> to vector<8x32xf32>
    %289 = arith.addf %287, %288 : vector<8x32xf32>
    %290 = arith.negf %289 : vector<8x32xf32>
    %291 = math.exp %290 : vector<8x32xf32>
    %cst_108 = arith.constant 1.000000e+00 : f32
    %292 = vector.broadcast %cst_108 : f32 to vector<8x32xf32>
    %293 = arith.addf %292, %291 : vector<8x32xf32>
    %294 = arith.divf %292, %293 : vector<8x32xf32>
    %295 = vector.extract_strided_slice %286 {offsets = [0, 32], sizes = [8, 32], strides = [1, 1]} : vector<8x96xf32> to vector<8x32xf32>
    %296 = vector.extract_strided_slice %284 {offsets = [0, 32], sizes = [8, 32], strides = [1, 1]} : vector<8x96xf32> to vector<8x32xf32>
    %297 = arith.addf %295, %296 : vector<8x32xf32>
    %298 = arith.negf %297 : vector<8x32xf32>
    %299 = math.exp %298 : vector<8x32xf32>
    %cst_109 = arith.constant 1.000000e+00 : f32
    %300 = vector.broadcast %cst_109 : f32 to vector<8x32xf32>
    %301 = arith.addf %300, %299 : vector<8x32xf32>
    %302 = arith.divf %300, %301 : vector<8x32xf32>
    %303 = vector.extract_strided_slice %286 {offsets = [0, 64], sizes = [8, 32], strides = [1, 1]} : vector<8x96xf32> to vector<8x32xf32>
    %304 = vector.extract_strided_slice %284 {offsets = [0, 64], sizes = [8, 32], strides = [1, 1]} : vector<8x96xf32> to vector<8x32xf32>
    %305 = arith.addf %304, %12 : vector<8x32xf32>
    %306 = arith.mulf %294, %305 : vector<8x32xf32>
    %307 = arith.addf %303, %306 : vector<8x32xf32>
    %308 = math.tanh %307 : vector<8x32xf32>
    %cst_110 = arith.constant 1.000000e+00 : f32
    %309 = vector.broadcast %cst_110 : f32 to vector<8x32xf32>
    %310 = arith.subf %309, %302 : vector<8x32xf32>
    %311 = arith.mulf %310, %308 : vector<8x32xf32>
    %312 = arith.mulf %302, %281 : vector<8x32xf32>
    %313 = arith.addf %311, %312 : vector<8x32xf32>
    %c0_111 = arith.constant 0 : index
    %c0_112 = arith.constant 0 : index
    %314 = vector.load %arg8[%c0_111, %c0_112] : memref<8x32xf32, #tpu.memory_space<vmem>>, vector<8x32xf32>
    tpu.vector_store %arg8[%c0_111, %c0_112], %313 {strides = array<i32>} : memref<8x32xf32, #tpu.memory_space<vmem>>, vector<8x32xf32>,
    %315 = arith.index_cast %280 : i32 to index
    %c0_113 = arith.constant 0 : index
    %316 = vector.load %arg7[%315, %c0_113] : memref<64x32xf32, #tpu.memory_space<vmem>>, vector<8x32xf32>
    tpu.vector_store %arg7[%315, %c0_113], %313 {strides = array<i32>} : memref<64x32xf32, #tpu.memory_space<vmem>>, vector<8x32xf32>,
    %c8_i32_114 = arith.constant 8 : i32
    return
  }
  func.func @transform_0(%arg0: i32) -> (i32, i32) {
    %c0_i32 = arith.constant 0 : i32
    %c0_i32_0 = arith.constant 0 : i32
    return %arg0, %c0_i32 : i32, i32
  }
  func.func @transform_1(%arg0: i32) -> (i32, i32) {
    %c0_i32 = arith.constant 0 : i32
    %c0_i32_0 = arith.constant 0 : i32
    %c0_i32_1 = arith.constant 0 : i32
    return %c0_i32, %c0_i32_0 : i32, i32
  }
  func.func @transform_2(%arg0: i32) -> (i32, i32) {
    %c0_i32 = arith.constant 0 : i32
    %c0_i32_0 = arith.constant 0 : i32
    %c0_i32_1 = arith.constant 0 : i32
    return %c0_i32, %c0_i32_0 : i32, i32
  }
  func.func @transform_3(%arg0: i32) -> (i32, i32) {
    %c0_i32 = arith.constant 0 : i32
    %c0_i32_0 = arith.constant 0 : i32
    %c0_i32_1 = arith.constant 0 : i32
    return %c0_i32, %c0_i32_0 : i32, i32
  }
  func.func @transform_4(%arg0: i32) -> (i32, i32) {
    %c0_i32 = arith.constant 0 : i32
    %c0_i32_0 = arith.constant 0 : i32
    %c0_i32_1 = arith.constant 0 : i32
    return %c0_i32, %c0_i32_0 : i32, i32
  }
  func.func @transform_5(%arg0: i32) -> (i32, i32) {
    %c0_i32 = arith.constant 0 : i32
    %c0_i32_0 = arith.constant 0 : i32
    %c0_i32_1 = arith.constant 0 : i32
    return %c0_i32, %c0_i32_0 : i32, i32
  }
  func.func @transform_6(%arg0: i32) -> (i32, i32) {
    %c0_i32 = arith.constant 0 : i32
    %c0_i32_0 = arith.constant 0 : i32
    return %arg0, %c0_i32 : i32, i32
  }
}

module attributes {stable_mosaic.version = 11 : i64} {
  func.func @_proj_kernel(%arg0: i32, %arg1: i32, %arg2: memref<16x32xbf16, #tpu.memory_space<vmem>>, %arg3: memref<32x128xbf16, #tpu.memory_space<vmem>>, %arg4: memref<1x128xf32, #tpu.memory_space<vmem>>, %arg5: memref<16x128xf32, #tpu.memory_space<vmem>>) attributes {dimension_semantics = [#tpu.dimension_semantics<parallel>, #tpu.dimension_semantics<parallel>], iteration_bounds = array<i64: 1, 1>, scalar_prefetch = 0 : i64, scratch_operands = 0 : i64, tpu.core_type = #tpu.core_type<tc>, window_params = [{transform_indices = @transform_0, window_bounds = array<i64: 16, 32>}, {transform_indices = @transform_1, window_bounds = array<i64: 32, 128>}, {transform_indices = @transform_2, window_bounds = array<i64: 1, 128>}, {transform_indices = @transform_3, window_bounds = array<i64: 16, 128>}]} {
    %c0 = arith.constant 0 : index
    %c0_0 = arith.constant 0 : index
    %0 = vector.load %arg2[%c0, %c0_0] : memref<16x32xbf16, #tpu.memory_space<vmem>>, vector<16x32xbf16>
    %c0_1 = arith.constant 0 : index
    %c0_2 = arith.constant 0 : index
    %1 = vector.load %arg3[%c0_1, %c0_2] : memref<32x128xbf16, #tpu.memory_space<vmem>>, vector<32x128xbf16>
    %cst = arith.constant dense<0.000000e+00> : vector<16x128xf32>
    %2 = tpu.matmul %0, %1, %cst {dimension_numbers = #tpu.dot_dimension_numbers<[1], [0], [0], [1], [0, 0, 1, 1], [], []>} : vector<16x32xbf16>, vector<32x128xbf16>, vector<16x128xf32> -> vector<16x128xf32>
    %c0_3 = arith.constant 0 : index
    %c0_4 = arith.constant 0 : index
    %3 = vector.load %arg4[%c0_3, %c0_4] : memref<1x128xf32, #tpu.memory_space<vmem>>, vector<1x128xf32>
    %4 = vector.broadcast %3 : vector<1x128xf32> to vector<16x128xf32>
    %5 = arith.addf %2, %4 : vector<16x128xf32>
    %c0_5 = arith.constant 0 : index
    %c0_6 = arith.constant 0 : index
    %6 = vector.load %arg5[%c0_5, %c0_6] : memref<16x128xf32, #tpu.memory_space<vmem>>, vector<16x128xf32>
    tpu.vector_store %arg5[%c0_5, %c0_6], %5 {strides = array<i32>} : memref<16x128xf32, #tpu.memory_space<vmem>>, vector<16x128xf32>,
    return
  }
  func.func @transform_0(%arg0: i32, %arg1: i32) -> (i32, i32) {
    %c0_i32 = arith.constant 0 : i32
    %c0_i32_0 = arith.constant 0 : i32
    return %arg1, %c0_i32 : i32, i32
  }
  func.func @transform_1(%arg0: i32, %arg1: i32) -> (i32, i32) {
    %c0_i32 = arith.constant 0 : i32
    %c0_i32_0 = arith.constant 0 : i32
    return %c0_i32, %arg0 : i32, i32
  }
  func.func @transform_2(%arg0: i32, %arg1: i32) -> (i32, i32) {
    %c0_i32 = arith.constant 0 : i32
    %c0_i32_0 = arith.constant 0 : i32
    return %c0_i32, %arg0 : i32, i32
  }
  func.func @transform_3(%arg0: i32, %arg1: i32) -> (i32, i32) {
    %c0_i32 = arith.constant 0 : i32
    return %arg1, %arg0 : i32, i32
  }
}

</mosaic_0001>

<llo_original>
// kernel: decoder_forward.3
$region0: #{decoder_forward.3}
  #allocation0 [shape = 'u32[]', space=smem, size = 0x4, offset = 0x4, fixed_abs, tag = 'smem constant byte address 0x4 - core index']
  #allocation1 [shape = 'u32[72,128]{1,0:T(1,128)}', space=vmem, size = 0x9000, scoped, tag = 'internal scratch']
  %s0 = inlined_call_operand.vmem [shape: bf16[16,32], index: 0, kind: input, shape index: {}]
  %s1 = inlined_call_operand.vmem [shape: bf16[32,128], index: 1, kind: input, shape index: {}]
  %s2 = inlined_call_operand.vmem [shape: f32[1,128], index: 2, kind: input, shape index: {}]
  %s3 = inlined_call_operand.vmem [shape: f32[16,128], index: 3, kind: output, shape index: {}]
  %s4 = sld [smem:[#allocation0]]
  $region22: #{decoder_forward.3} parent=0
    _
  %s6 = ssub.s32 1, %s4
  %s7 = scalar_select 0, %s6, %s4
  // Predicated region
  $region2: #{decoder_forward.3} parent=0 // pred_check
    _
  $region3: #{decoder_forward.3} parent=0 // pred_check_branch
    %9 = sbr.rel (0) target = $region5
  $region4: #{decoder_forward.3} parent=0 // pred_region
    _
  $region5: #{decoder_forward.3} parent=0 // pred_fallthru
    _
  // Predicated region
  $region6: #{decoder_forward.3} parent=0 // pred_check
    _
  $region7: #{decoder_forward.3} parent=0 // pred_check_branch
    %11 = sbr.rel (0) target = $region9
  $region8: #{decoder_forward.3} parent=0 // pred_region
    _
  $region9: #{decoder_forward.3} parent=0 // pred_fallthru
    _
  // Predicated region
  $region10: #{decoder_forward.3} parent=0 // pred_check
    _
  $region11: #{decoder_forward.3} parent=0 // pred_check_branch
    %13 = sbr.rel (0) target = $region13
  $region12: #{decoder_forward.3} parent=0 // pred_region
    _
  $region13: #{decoder_forward.3} parent=0 // pred_fallthru
    _
  %v15 = vld [vmem:[%s0] sm:$0xf]
  %v16 = vld [vmem:[%s0 + $0x4] sm:$0xf]
  %v17 = vld [vmem:[%s1] sm:$0xf]
  %v18 = vld [vmem:[%s1 + $0x4] sm:$0xf]
  %v19 = vld [vmem:[%s1 + $0x8] sm:$0xf]
  %v20 = vld [vmem:[%s1 + $0xc] sm:$0xf]
  %v21 = vld [vmem:[%s2] sm:$0x1]
  %v23 = vperm.slane %v21, 0
  %v27 = vunpack.c.l.b16 %v15
  %v28 = vunpack.c.l.b16 %v16
  %v29 = vpack.c.b16 %v28, %v27
  %v34 = vunpack.c.l.b16 %v17
  %v35 = vunpack.c.l.b16 %v18
  %v36 = vunpack.c.l.b16 %v19
  %v37 = vunpack.c.l.b16 %v20
  %v38 = vpack.c.b16 %v35, %v34
  %v39 = vpack.c.b16 %v37, %v36
  %vm42 = vcmask 261120
  %v44 = vsel %vm42, %v29, 0
  %46 = vmatpush.bf16.msra.mxu0 0
  %47 = vmatpush.bf16.msra.mxu0 0
  %48 = vmatpush.bf16.msra.mxu0 0
  %49 = vmatpush.bf16.msra.mxu0 0
  %50 = vmatpush.bf16.msra.mxu0 0
  %51 = vmatpush.bf16.msra.mxu0 0
  %52 = vmatpush.bf16.msra.mxu0 %v39
  %53 = vmatpush.bf16.msra.mxu0 %v38
  %54 = vmatmul.bf16.gmra.mxu0 %v44
  %v55 = vpop.f32.mrf.mxu0
  %v56 = vadd.f32 %v23, %v55
  %v57 = vpop.f32.mrf.mxu0
  %v58 = vadd.f32 %v23, %v57
  %59 = vdwg.mxu0
  %60 = vst [vmem:[%s3] sm:$0xff] %v56
  %61 = vst [vmem:[%s3 + $0x8] sm:$0xff] %v58
  // Predicated region
  $region14: #{decoder_forward.3} parent=0 // pred_check
    _
  $region15: #{decoder_forward.3} parent=0 // pred_check_branch
    %63 = sbr.rel (0) target = $region17
  $region16: #{decoder_forward.3} parent=0 // pred_region
    _
  $region17: #{decoder_forward.3} parent=0 // pred_fallthru
    _
  // Predicated region
  $region18: #{decoder_forward.3} parent=0 // pred_check
    _
  $region19: #{decoder_forward.3} parent=0 // pred_check_branch
    %65 = sbr.rel (0) target = $region21
  $region20: #{decoder_forward.3} parent=0 // pred_region
    _
  $region21: #{decoder_forward.3} parent=0 // pred_fallthru
    _

// kernel: decoder_forward.2
$region0: #{decoder_forward.2}
  #allocation0 [shape = 'u32[]', space=smem, size = 0x4, offset = 0x4, fixed_abs, tag = 'smem constant byte address 0x4 - core index']
  #allocation1 [shape = 'u32[72,128]{1,0:T(1,128)}', space=vmem, size = 0x9000, scoped, tag = 'internal scratch']
  #allocation2 [shape = 'f32[8,32]{1,0:T(8,128)}', space=vmem, size = 0x1000, scoped, tag = 'scratch operand']
  #allocation3 [shape = 'f32[64,96]{1,0:T(8,128)}', space=vmem, size = 0x8000, scoped, tag = 'scratch operand']
  %s0 = inlined_call_operand.vmem [shape: bf16[64,32], index: 0, kind: input, shape index: {}]
  %s1 = inlined_call_operand.vmem [shape: f32[8,32], index: 1, kind: input, shape index: {}]
  %s2 = inlined_call_operand.vmem [shape: bf16[32,96], index: 2, kind: input, shape index: {}]
  %s3 = inlined_call_operand.vmem [shape: bf16[32,96], index: 3, kind: input, shape index: {}]
  %s4 = inlined_call_operand.vmem [shape: f32[1,96], index: 4, kind: input, shape index: {}]
  %s5 = inlined_call_operand.vmem [shape: f32[1,32], index: 5, kind: input, shape index: {}]
  %s6 = inlined_call_operand.vmem [shape: f32[64,32], index: 6, kind: output, shape index: {}]
  %s7 = sld [smem:[#allocation0]]
  $region38: #{decoder_forward.2} parent=0
    _
  %s9 = ssub.s32 1, %s7
  %s10 = scalar_select 0, %s9, %s7
  // Predicated region
  $region2: #{decoder_forward.2} parent=0 // pred_check
    _
  $region3: #{decoder_forward.2} parent=0 // pred_check_branch
    %12 = sbr.rel (0) target = $region5
  $region4: #{decoder_forward.2} parent=0 // pred_region
    _
  $region5: #{decoder_forward.2} parent=0 // pred_fallthru
    _
  // Predicated region
  $region6: #{decoder_forward.2} parent=0 // pred_check
    _
  $region7: #{decoder_forward.2} parent=0 // pred_check_branch
    %14 = sbr.rel (0) target = $region9
  $region8: #{decoder_forward.2} parent=0 // pred_region
    _
  $region9: #{decoder_forward.2} parent=0 // pred_fallthru
    _
  // Predicated region
  $region10: #{decoder_forward.2} parent=0 // pred_check
    _
  $region11: #{decoder_forward.2} parent=0 // pred_check_branch
    %16 = sbr.rel (0) target = $region13
  $region12: #{decoder_forward.2} parent=0 // pred_region
    _
  $region13: #{decoder_forward.2} parent=0 // pred_fallthru
    _
  // Predicated region
  $region14: #{decoder_forward.2} parent=0 // pred_check
    _
  $region15: #{decoder_forward.2} parent=0 // pred_check_branch
    %18 = sbr.rel (0) target = $region17
  $region16: #{decoder_forward.2} parent=0 // pred_region
    _
  $region17: #{decoder_forward.2} parent=0 // pred_fallthru
    _
  // Predicated region
  $region18: #{decoder_forward.2} parent=0 // pred_check
    _
  $region19: #{decoder_forward.2} parent=0 // pred_check_branch
    %20 = sbr.rel (0) target = $region21
  $region20: #{decoder_forward.2} parent=0 // pred_region
    _
  $region21: #{decoder_forward.2} parent=0 // pred_fallthru
    _
  // Predicated region
  $region22: #{decoder_forward.2} parent=0 // pred_check
    _
  $region23: #{decoder_forward.2} parent=0 // pred_check_branch
    %22 = sbr.rel (0) target = $region25
  $region24: #{decoder_forward.2} parent=0 // pred_region
    _
  $region25: #{decoder_forward.2} parent=0 // pred_fallthru
    _
  %p24 = scmp.eq.s32.totalorder 0, 0
  // Predicated region
  $region26: #{decoder_forward.2} parent=0 // pred_check
    %p25 = pneg %p24
  $region27: #{decoder_forward.2} parent=0 // pred_check_branch
    %27 = sbr.rel (%p25) target = $region29
  $region28: #{decoder_forward.2} parent=0 // pred_region
    %v28 = vld [vmem:[%s1] sm:$0xff]
    %vm29 = vcmask 261120
    %30 = vst.msk [vmem:[#allocation2] sm:$0xff] %vm29, %v28
  $region29: #{decoder_forward.2} parent=0 // pred_fallthru
    _
  %v31 = vld [vmem:[%s0] sm:$0xf]
  %v32 = vld [vmem:[%s0 + $0x4] sm:$0xf]
  %v33 = vld [vmem:[%s0 + $0x8] sm:$0xf]
  %v34 = vld [vmem:[%s0 + $0xc] sm:$0xf]
  %v35 = vld [vmem:[%s0 + $0x10] sm:$0xf]
  %v36 = vld [vmem:[%s0 + $0x14] sm:$0xf]
  %v37 = vld [vmem:[%s0 + $0x18] sm:$0xf]
  %v38 = vld [vmem:[%s0 + $0x1c] sm:$0xf]
  %v39 = vld [vmem:[%s2] sm:$0xf]
  %v40 = vld [vmem:[%s2 + $0x4] sm:$0xf]
  %v41 = vld [vmem:[%s2 + $0x8] sm:$0xf]
  %v42 = vld [vmem:[%s2 + $0xc] sm:$0xf]
  %v43 = vld [vmem:[%s4] sm:$0x1]
  %v45 = vperm.slane %v43, 0
  %v55 = vunpack.c.l.b16 %v31
  %v56 = vunpack.c.l.b16 %v32
  %v57 = vunpack.c.l.b16 %v33
  %v58 = vunpack.c.l.b16 %v34
  %v59 = vunpack.c.l.b16 %v35
  %v60 = vunpack.c.l.b16 %v36
  %v61 = vunpack.c.l.b16 %v37
  %v62 = vunpack.c.l.b16 %v38
  %v63 = vpack.c.b16 %v56, %v55
  %v64 = vpack.c.b16 %v58, %v57
  %v65 = vpack.c.b16 %v60, %v59
  %v66 = vpack.c.b16 %v62, %v61
  %v71 = vunpack.c.l.b16 %v39
  %v72 = vunpack.c.l.b16 %v40
  %v73 = vunpack.c.l.b16 %v41
  %v74 = vunpack.c.l.b16 %v42
  %v75 = vpack.c.b16 %v72, %v71
  %v76 = vpack.c.b16 %v74, %v73
  %vm79 = vcmask 261120
  %v81 = vsel %vm79, %v63, 0
  %v84 = vsel %vm79, %v64, 0
  %v87 = vsel %vm79, %v65, 0
  %v90 = vsel %vm79, %v66, 0
  %92 = vmatpush.bf16.msra.mxu0 0
  %93 = vmatpush.bf16.msra.mxu0 0
  %94 = vmatpush.bf16.msra.mxu0 0
  %95 = vmatpush.bf16.msra.mxu0 0
  %96 = vmatpush.bf16.msra.mxu0 0
  %97 = vmatpush.bf16.msra.mxu0 0
  %98 = vmatpush.bf16.msra.mxu0 %v76
  %99 = vmatpush.bf16.msra.mxu0 %v75
  %100 = vmatmul.bf16.gmra.mxu0 %v81
  %v101 = vpop.f32.mrf.mxu0
  %v102 = vadd.f32 %v45, %v101
  %v103 = vpop.f32.mrf.mxu0
  %v104 = vadd.f32 %v45, %v103
  %105 = vmatmul.bf16.gmra.mxu0 %v84
  %v106 = vpop.f32.mrf.mxu0
  %v107 = vadd.f32 %v45, %v106
  %v108 = vpop.f32.mrf.mxu0
  %v109 = vadd.f32 %v45, %v108
  %110 = vmatmul.bf16.gmra.mxu0 %v87
  %v111 = vpop.f32.mrf.mxu0
  %v112 = vadd.f32 %v45, %v111
  %v113 = vpop.f32.mrf.mxu0
  %v114 = vadd.f32 %v45, %v113
  %115 = vmatmul.bf16.gmra.mxu0 %v90
  %v116 = vpop.f32.mrf.mxu0
  %v117 = vadd.f32 %v45, %v116
  %v118 = vpop.f32.mrf.mxu0
  %v119 = vadd.f32 %v45, %v118
  %120 = vdwg.mxu0
  %vm121 = vcmask 785408
  %122 = vst.msk [vmem:[#allocation3] sm:$0xff] %vm121, %v102
  %123 = vst.msk [vmem:[#allocation3 + $0x8] sm:$0xff] %vm121, %v104
  %124 = vst.msk [vmem:[#allocation3 + $0x10] sm:$0xff] %vm121, %v107
  %125 = vst.msk [vmem:[#allocation3 + $0x18] sm:$0xff] %vm121, %v109
  %126 = vst.msk [vmem:[#allocation3 + $0x20] sm:$0xff] %vm121, %v112
  %127 = vst.msk [vmem:[#allocation3 + $0x28] sm:$0xff] %vm121, %v114
  %128 = vst.msk [vmem:[#allocation3 + $0x30] sm:$0xff] %vm121, %v117
  %129 = vst.msk [vmem:[#allocation3 + $0x38] sm:$0xff] %vm121, %v119
  %v130 = vld [vmem:[%s5] sm:$0x1]
  %v132 = vperm.slane %v130, 0
  %v133 = vld [vmem:[#allocation2] sm:$0xff]
  %v134 = vpack.c.bf16 %v133, %v133
  %v135 = vld [vmem:[%s3] sm:$0xf]
  %v136 = vld [vmem:[%s3 + $0x4] sm:$0xf]
  %v137 = vld [vmem:[%s3 + $0x8] sm:$0xf]
  %v138 = vld [vmem:[%s3 + $0xc] sm:$0xf]
  %v143 = vunpack.c.l.b16 %v135
  %v144 = vunpack.c.l.b16 %v136
  %v145 = vunpack.c.l.b16 %v137
  %v146 = vunpack.c.l.b16 %v138
  %v147 = vpack.c.b16 %v144, %v143
  %v148 = vpack.c.b16 %v146, %v145
  %v152 = vsel %vm79, %v134, 0
  %154 = vmatpush.bf16.msra.mxu0 0
  %155 = vmatpush.bf16.msra.mxu0 0
  %156 = vmatpush.bf16.msra.mxu0 0
  %157 = vmatpush.bf16.msra.mxu0 0
  %158 = vmatpush.bf16.msra.mxu0 0
  %159 = vmatpush.bf16.msra.mxu0 0
  %160 = vmatpush.bf16.msra.mxu0 %v148
  %161 = vmatpush.bf16.msra.mxu0 %v147
  %162 = vmatmul.bf16.gmra.mxu0 %v152
  %v163 = vpop.f32.mrf.mxu0
  %v164 = vadd.f32 0.0, %v163
  %v165 = vpop.f32.mrf.mxu0
  %166 = vdwg.mxu0
  %v167 = vld [vmem:[#allocation3] sm:$0xff]
  %v168 = vadd.f32 %v167, %v164
  %v169 = vxor.u32 %v168, 2147483648
  %v170 = vmul.f32 %v169, 1.442695
  %v171 = vpow.pop %v170
  %v172 = vadd.f32 %v171, 1.0
  %v173 = vrcp.pop %v172
  %v174 = vmul.f32 %v172, %v173
  %v175 = vsub.f32 1.0, %v174
  %v176 = vmul.f32 %v173, %v175
  %v177 = vadd.f32 %v173, %v176
  %vm178 = vweird.f32 %v172
  %vm179 = vweird.f32 %v173
  %vm180 = vmor %vm178, %vm179
  %v181 = vsel %vm180, %v173, %v177
  %v182 = vand.u32 2147483647, %v172
  %vm183 = vcmp.eq.f32.partialorder %v182, 8.507059e+37
  %v184 = vand.u32 %v172, 2147483648
  %v185 = vor.u32 1.1754944e-38, %v184
  %v186 = vsel %vm183, %v185, %v181
  %v187 = vmul.f32 1.0, %v186
  %188 = vrot.lane.b32.xlu0 %v132, 64
  %v189 = vpop.permute.xlu0 %188
  %v191 = vadd.f32 %v164, %v189
  %193 = vrot.lane.b32.xlu0 %v191, 64
  %v194 = vpop.permute.xlu0 %193
  %v196 = vmul.f32 %v187, %v194
  %198 = vrot.lane.b32.xlu0 %v196, 64
  %v199 = vpop.permute.xlu0 %198
  %v201 = vadd.f32 %v167, %v199
  %v202 = vtanh.pop %v201
  %v203 = vsub.f32 1.0, %v187
  %205 = vrot.lane.b32.xlu0 %v202, 96
  %v206 = vpop.permute.xlu0 %205
  %v208 = vmul.f32 %v203, %v206
  %210 = vrot.lane.b32.xlu0 %v133, 32
  %v211 = vpop.permute.xlu0 %210
  %v213 = vmul.f32 %v187, %v211
  %v214 = vadd.f32 %v208, %v213
  %216 = vrot.lane.b32.xlu0 %v214, 96
  %v217 = vpop.permute.xlu0 %216
  %219 = vst.msk [vmem:[#allocation2] sm:$0xff] %vm79, %v217
  %220 = vst.msk [vmem:[%s6] sm:$0xff] %vm79, %v217
  %v221 = vld [vmem:[#allocation2] sm:$0xff]
  %v222 = vpack.c.bf16 %v221, %v221
  %v223 = vld [vmem:[%s3] sm:$0xf]
  %v224 = vld [vmem:[%s3 + $0x4] sm:$0xf]
  %v225 = vld [vmem:[%s3 + $0x8] sm:$0xf]
  %v226 = vld [vmem:[%s3 + $0xc] sm:$0xf]
  %v231 = vunpack.c.l.b16 %v223
  %v232 = vunpack.c.l.b16 %v224
  %v233 = vunpack.c.l.b16 %v225
  %v234 = vunpack.c.l.b16 %v226
  %v235 = vpack.c.b16 %v232, %v231
  %v236 = vpack.c.b16 %v234, %v233
  %v240 = vsel %vm79, %v222, 0
  %242 = vmatpush.bf16.msra.mxu0 0
  %243 = vmatpush.bf16.msra.mxu0 0
  %244 = vmatpush.bf16.msra.mxu0 0
  %245 = vmatpush.bf16.msra.mxu0 0
  %246 = vmatpush.bf16.msra.mxu0 0
  %247 = vmatpush.bf16.msra.mxu0 0
  %248 = vmatpush.bf16.msra.mxu0 %v236
  %249 = vmatpush.bf16.msra.mxu0 %v235
  %250 = vmatmul.bf16.gmra.mxu0 %v240
  %v251 = vpop.f32.mrf.mxu0
  %v252 = vadd.f32 0.0, %v251
  %v253 = vpop.f32.mrf.mxu0
  %254 = vdwg.mxu0
  %s255 = scalar_lea.vmem [#allocation3], 8
  %v256 = vld [vmem:[%s255] sm:$0xff]
  %v257 = vadd.f32 %v256, %v252
  %v258 = vxor.u32 %v257, 2147483648
  %v259 = vmul.f32 %v258, 1.442695
  %v260 = vpow.pop %v259
  %v261 = vadd.f32 %v260, 1.0
  %v262 = vrcp.pop %v261
  %v263 = vmul.f32 %v261, %v262
  %v264 = vsub.f32 1.0, %v263
  %v265 = vmul.f32 %v262, %v264
  %v266 = vadd.f32 %v262, %v265
  %vm267 = vweird.f32 %v261
  %vm268 = vweird.f32 %v262
  %vm269 = vmor %vm267, %vm268
  %v270 = vsel %vm269, %v262, %v266
  %v271 = vand.u32 2147483647, %v261
  %vm272 = vcmp.eq.f32.partialorder %v271, 8.507059e+37
  %v273 = vand.u32 %v261, 2147483648
  %v274 = vor.u32 1.1754944e-38, %v273
  %v275 = vsel %vm272, %v274, %v270
  %v276 = vmul.f32 1.0, %v275
  %v277 = vadd.f32 %v252, %v189
  %279 = vrot.lane.b32.xlu0 %v277, 64
  %v280 = vpop.permute.xlu0 %279
  %v282 = vmul.f32 %v276, %v280
  %284 = vrot.lane.b32.xlu0 %v282, 64
  %v285 = vpop.permute.xlu0 %284
  %v287 = vadd.f32 %v256, %v285
  %v288 = vtanh.pop %v287
  %v289 = vsub.f32 1.0, %v276
  %291 = vrot.lane.b32.xlu0 %v288, 96
  %v292 = vpop.permute.xlu0 %291
  %v294 = vmul.f32 %v289, %v292
  %296 = vrot.lane.b32.xlu0 %v221, 32
  %v297 = vpop.permute.xlu0 %296
  %v299 = vmul.f32 %v276, %v297
  %v300 = vadd.f32 %v294, %v299
  %302 = vrot.lane.b32.xlu0 %v300, 96
  %v303 = vpop.permute.xlu0 %302
  %305 = vst.msk [vmem:[#allocation2] sm:$0xff] %vm79, %v303
  %s306 = scalar_lea.vmem %s6, 8
  %307 = vst.msk [vmem:[%s306] sm:$0xff] %vm79, %v303
  %v308 = vld [vmem:[#allocation2] sm:$0xff]
  %v309 = vpack.c.bf16 %v308, %v308
  %v310 = vld [vmem:[%s3] sm:$0xf]
  %v311 = vld [vmem:[%s3 + $0x4] sm:$0xf]
  %v312 = vld [vmem:[%s3 + $0x8] sm:$0xf]
  %v313 = vld [vmem:[%s3 + $0xc] sm:$0xf]
  %v318 = vunpack.c.l.b16 %v310
  %v319 = vunpack.c.l.b16 %v311
  %v320 = vunpack.c.l.b16 %v312
  %v321 = vunpack.c.l.b16 %v313
  %v322 = vpack.c.b16 %v319, %v318
  %v323 = vpack.c.b16 %v321, %v320
  %v327 = vsel %vm79, %v309, 0
  %329 = vmatpush.bf16.msra.mxu0 0
  %330 = vmatpush.bf16.msra.mxu0 0
  %331 = vmatpush.bf16.msra.mxu0 0
  %332 = vmatpush.bf16.msra.mxu0 0
  %333 = vmatpush.bf16.msra.mxu0 0
  %334 = vmatpush.bf16.msra.mxu0 0
  %335 = vmatpush.bf16.msra.mxu0 %v323
  %336 = vmatpush.bf16.msra.mxu0 %v322
  %337 = vmatmul.bf16.gmra.mxu0 %v327
  %v338 = vpop.f32.mrf.mxu0
  %v339 = vadd.f32 0.0, %v338
  %v340 = vpop.f32.mrf.mxu0
  %341 = vdwg.mxu0
  %s342 = scalar_lea.vmem [#allocation3], 16
  %v343 = vld [vmem:[%s342] sm:$0xff]
  %v344 = vadd.f32 %v343, %v339
  %v345 = vxor.u32 %v344, 2147483648
  %v346 = vmul.f32 %v345, 1.442695
  %v347 = vpow.pop %v346
  %v348 = vadd.f32 %v347, 1.0
  %v349 = vrcp.pop %v348
  %v350 = vmul.f32 %v348, %v349
  %v351 = vsub.f32 1.0, %v350
  %v352 = vmul.f32 %v349, %v351
  %v353 = vadd.f32 %v349, %v352
  %vm354 = vweird.f32 %v348
  %vm355 = vweird.f32 %v349
  %vm356 = vmor %vm354, %vm355
  %v357 = vsel %vm356, %v349, %v353
  %v358 = vand.u32 2147483647, %v348
  %vm359 = vcmp.eq.f32.partialorder %v358, 8.507059e+37
  %v360 = vand.u32 %v348, 2147483648
  %v361 = vor.u32 1.1754944e-38, %v360
  %v362 = vsel %vm359, %v361, %v357
  %v363 = vmul.f32 1.0, %v362
  %v364 = vadd.f32 %v339, %v189
  %366 = vrot.lane.b32.xlu0 %v364, 64
  %v367 = vpop.permute.xlu0 %366
  %v369 = vmul.f32 %v363, %v367
  %371 = vrot.lane.b32.xlu0 %v369, 64
  %v372 = vpop.permute.xlu0 %371
  %v374 = vadd.f32 %v343, %v372
  %v375 = vtanh.pop %v374
  %v376 = vsub.f32 1.0, %v363
  %378 = vrot.lane.b32.xlu0 %v375, 96
  %v379 = vpop.permute.xlu0 %378
  %v381 = vmul.f32 %v376, %v379
  %383 = vrot.lane.b32.xlu0 %v308, 32
  %v384 = vpop.permute.xlu0 %383
  %v386 = vmul.f32 %v363, %v384
  %v387 = vadd.f32 %v381, %v386
  %389 = vrot.lane.b32.xlu0 %v387, 96
  %v390 = vpop.permute.xlu0 %389
  %392 = vst.msk [vmem:[#allocation2] sm:$0xff] %vm79, %v390
  %s393 = scalar_lea.vmem %s6, 16
  %394 = vst.msk [vmem:[%s393] sm:$0xff] %vm79, %v390
  %v395 = vld [vmem:[#allocation2] sm:$0xff]
  %v396 = vpack.c.bf16 %v395, %v395
  %v397 = vld [vmem:[%s3] sm:$0xf]
  %v398 = vld [vmem:[%s3 + $0x4] sm:$0xf]
  %v399 = vld [vmem:[%s3 + $0x8] sm:$0xf]
  %v400 = vld [vmem:[%s3 + $0xc] sm:$0xf]
  %v405 = vunpack.c.l.b16 %v397
  %v406 = vunpack.c.l.b16 %v398
  %v407 = vunpack.c.l.b16 %v399
  %v408 = vunpack.c.l.b16 %v400
  %v409 = vpack.c.b16 %v406, %v405
  %v410 = vpack.c.b16 %v408, %v407
  %v414 = vsel %vm79, %v396, 0
  %416 = vmatpush.bf16.msra.mxu0 0
  %417 = vmatpush.bf16.msra.mxu0 0
  %418 = vmatpush.bf16.msra.mxu0 0
  %419 = vmatpush.bf16.msra.mxu0 0
  %420 = vmatpush.bf16.msra.mxu0 0
  %421 = vmatpush.bf16.msra.mxu0 0
  %422 = vmatpush.bf16.msra.mxu0 %v410
  %423 = vmatpush.bf16.msra.mxu0 %v409
  %424 = vmatmul.bf16.gmra.mxu0 %v414
  %v425 = vpop.f32.mrf.mxu0
  %v426 = vadd.f32 0.0, %v425
  %v427 = vpop.f32.mrf.mxu0
  %428 = vdwg.mxu0
  %s429 = scalar_lea.vmem [#allocation3], 24
  %v430 = vld [vmem:[%s429] sm:$0xff]
  %v431 = vadd.f32 %v430, %v426
  %v432 = vxor.u32 %v431, 2147483648
  %v433 = vmul.f32 %v432, 1.442695
  %v434 = vpow.pop %v433
  %v435 = vadd.f32 %v434, 1.0
  %v436 = vrcp.pop %v435
  %v437 = vmul.f32 %v435, %v436
  %v438 = vsub.f32 1.0, %v437
  %v439 = vmul.f32 %v436, %v438
  %v440 = vadd.f32 %v436, %v439
  %vm441 = vweird.f32 %v435
  %vm442 = vweird.f32 %v436
  %vm443 = vmor %vm441, %vm442
  %v444 = vsel %vm443, %v436, %v440
  %v445 = vand.u32 2147483647, %v435
  %vm446 = vcmp.eq.f32.partialorder %v445, 8.507059e+37
  %v447 = vand.u32 %v435, 2147483648
  %v448 = vor.u32 1.1754944e-38, %v447
  %v449 = vsel %vm446, %v448, %v444
  %v450 = vmul.f32 1.0, %v449
  %v451 = vadd.f32 %v426, %v189
  %453 = vrot.lane.b32.xlu0 %v451, 64
  %v454 = vpop.permute.xlu0 %453
  %v456 = vmul.f32 %v450, %v454
  %458 = vrot.lane.b32.xlu0 %v456, 64
  %v459 = vpop.permute.xlu0 %458
  %v461 = vadd.f32 %v430, %v459
  %v462 = vtanh.pop %v461
  %v463 = vsub.f32 1.0, %v450
  %465 = vrot.lane.b32.xlu0 %v462, 96
  %v466 = vpop.permute.xlu0 %465
  %v468 = vmul.f32 %v463, %v466
  %470 = vrot.lane.b32.xlu0 %v395, 32
  %v471 = vpop.permute.xlu0 %470
  %v473 = vmul.f32 %v450, %v471
  %v474 = vadd.f32 %v468, %v473
  %476 = vrot.lane.b32.xlu0 %v474, 96
  %v477 = vpop.permute.xlu0 %476
  %479 = vst.msk [vmem:[#allocation2] sm:$0xff] %vm79, %v477
  %s480 = scalar_lea.vmem %s6, 24
  %481 = vst.msk [vmem:[%s480] sm:$0xff] %vm79, %v477
  %v482 = vld [vmem:[#allocation2] sm:$0xff]
  %v483 = vpack.c.bf16 %v482, %v482
  %v484 = vld [vmem:[%s3] sm:$0xf]
  %v485 = vld [vmem:[%s3 + $0x4] sm:$0xf]
  %v486 = vld [vmem:[%s3 + $0x8] sm:$0xf]
  %v487 = vld [vmem:[%s3 + $0xc] sm:$0xf]
  %v492 = vunpack.c.l.b16 %v484
  %v493 = vunpack.c.l.b16 %v485
  %v494 = vunpack.c.l.b16 %v486
  %v495 = vunpack.c.l.b16 %v487
  %v496 = vpack.c.b16 %v493, %v492
  %v497 = vpack.c.b16 %v495, %v494
  %v501 = vsel %vm79, %v483, 0
  %503 = vmatpush.bf16.msra.mxu0 0
  %504 = vmatpush.bf16.msra.mxu0 0
  %505 = vmatpush.bf16.msra.mxu0 0
  %506 = vmatpush.bf16.msra.mxu0 0
  %507 = vmatpush.bf16.msra.mxu0 0
  %508 = vmatpush.bf16.msra.mxu0 0
  %509 = vmatpush.bf16.msra.mxu0 %v497
  %510 = vmatpush.bf16.msra.mxu0 %v496
  %511 = vmatmul.bf16.gmra.mxu0 %v501
  %v512 = vpop.f32.mrf.mxu0
  %v513 = vadd.f32 0.0, %v512
  %v514 = vpop.f32.mrf.mxu0
  %515 = vdwg.mxu0
  %s516 = scalar_lea.vmem [#allocation3], 32
  %v517 = vld [vmem:[%s516] sm:$0xff]
  %v518 = vadd.f32 %v517, %v513
  %v519 = vxor.u32 %v518, 2147483648
  %v520 = vmul.f32 %v519, 1.442695
  %v521 = vpow.pop %v520
  %v522 = vadd.f32 %v521, 1.0
  %v523 = vrcp.pop %v522
  %v524 = vmul.f32 %v522, %v523
  %v525 = vsub.f32 1.0, %v524
  %v526 = vmul.f32 %v523, %v525
  %v527 = vadd.f32 %v523, %v526
  %vm528 = vweird.f32 %v522
  %vm529 = vweird.f32 %v523
  %vm530 = vmor %vm528, %vm529
  %v531 = vsel %vm530, %v523, %v527
  %v532 = vand.u32 2147483647, %v522
  %vm533 = vcmp.eq.f32.partialorder %v532, 8.507059e+37
  %v534 = vand.u32 %v522, 2147483648
  %v535 = vor.u32 1.1754944e-38, %v534
  %v536 = vsel %vm533, %v535, %v531
  %v537 = vmul.f32 1.0, %v536
  %v538 = vadd.f32 %v513, %v189
  %540 = vrot.lane.b32.xlu0 %v538, 64
  %v541 = vpop.permute.xlu0 %540
  %v543 = vmul.f32 %v537, %v541
  %545 = vrot.lane.b32.xlu0 %v543, 64
  %v546 = vpop.permute.xlu0 %545
  %v548 = vadd.f32 %v517, %v546
  %v549 = vtanh.pop %v548
  %v550 = vsub.f32 1.0, %v537
  %552 = vrot.lane.b32.xlu0 %v549, 96
  %v553 = vpop.permute.xlu0 %552
  %v555 = vmul.f32 %v550, %v553
  %557 = vrot.lane.b32.xlu0 %v482, 32
  %v558 = vpop.permute.xlu0 %557
  %v560 = vmul.f32 %v537, %v558
  %v561 = vadd.f32 %v555, %v560
  %563 = vrot.lane.b32.xlu0 %v561, 96
  %v564 = vpop.permute.xlu0 %563
  %566 = vst.msk [vmem:[#allocation2] sm:$0xff] %vm79, %v564
  %s567 = scalar_lea.vmem %s6, 32
  %568 = vst.msk [vmem:[%s567] sm:$0xff] %vm79, %v564
  %v569 = vld [vmem:[#allocation2] sm:$0xff]
  %v570 = vpack.c.bf16 %v569, %v569
  %v571 = vld [vmem:[%s3] sm:$0xf]
  %v572 = vld [vmem:[%s3 + $0x4] sm:$0xf]
  %v573 = vld [vmem:[%s3 + $0x8] sm:$0xf]
  %v574 = vld [vmem:[%s3 + $0xc] sm:$0xf]
  %v579 = vunpack.c.l.b16 %v571
  %v580 = vunpack.c.l.b16 %v572
  %v581 = vunpack.c.l.b16 %v573
  %v582 = vunpack.c.l.b16 %v574
  %v583 = vpack.c.b16 %v580, %v579
  %v584 = vpack.c.b16 %v582, %v581
  %v588 = vsel %vm79, %v570, 0
  %590 = vmatpush.bf16.msra.mxu0 0
  %591 = vmatpush.bf16.msra.mxu0 0
  %592 = vmatpush.bf16.msra.mxu0 0
  %593 = vmatpush.bf16.msra.mxu0 0
  %594 = vmatpush.bf16.msra.mxu0 0
  %595 = vmatpush.bf16.msra.mxu0 0
  %596 = vmatpush.bf16.msra.mxu0 %v584
  %597 = vmatpush.bf16.msra.mxu0 %v583
  %598 = vmatmul.bf16.gmra.mxu0 %v588
  %v599 = vpop.f32.mrf.mxu0
  %v600 = vadd.f32 0.0, %v599
  %v601 = vpop.f32.mrf.mxu0
  %602 = vdwg.mxu0
  %s603 = scalar_lea.vmem [#allocation3], 40
  %v604 = vld [vmem:[%s603] sm:$0xff]
  %v605 = vadd.f32 %v604, %v600
  %v606 = vxor.u32 %v605, 2147483648
  %v607 = vmul.f32 %v606, 1.442695
  %v608 = vpow.pop %v607
  %v609 = vadd.f32 %v608, 1.0
  %v610 = vrcp.pop %v609
  %v611 = vmul.f32 %v609, %v610
  %v612 = vsub.f32 1.0, %v611
  %v613 = vmul.f32 %v610, %v612
  %v614 = vadd.f32 %v610, %v613
  %vm615 = vweird.f32 %v609
  %vm616 = vweird.f32 %v610
  %vm617 = vmor %vm615, %vm616
  %v618 = vsel %vm617, %v610, %v614
  %v619 = vand.u32 2147483647, %v609
  %vm620 = vcmp.eq.f32.partialorder %v619, 8.507059e+37
  %v621 = vand.u32 %v609, 2147483648
  %v622 = vor.u32 1.1754944e-38, %v621
  %v623 = vsel %vm620, %v622, %v618
  %v624 = vmul.f32 1.0, %v623
  %v625 = vadd.f32 %v600, %v189
  %627 = vrot.lane.b32.xlu0 %v625, 64
  %v628 = vpop.permute.xlu0 %627
  %v630 = vmul.f32 %v624, %v628
  %632 = vrot.lane.b32.xlu0 %v630, 64
  %v633 = vpop.permute.xlu0 %632
  %v635 = vadd.f32 %v604, %v633
  %v636 = vtanh.pop %v635
  %v637 = vsub.f32 1.0, %v624
  %639 = vrot.lane.b32.xlu0 %v636, 96
  %v640 = vpop.permute.xlu0 %639
  %v642 = vmul.f32 %v637, %v640
  %644 = vrot.lane.b32.xlu0 %v569, 32
  %v645 = vpop.permute.xlu0 %644
  %v647 = vmul.f32 %v624, %v645
  %v648 = vadd.f32 %v642, %v647
  %650 = vrot.lane.b32.xlu0 %v648, 96
  %v651 = vpop.permute.xlu0 %650
  %653 = vst.msk [vmem:[#allocation2] sm:$0xff] %vm79, %v651
  %s654 = scalar_lea.vmem %s6, 40
  %655 = vst.msk [vmem:[%s654] sm:$0xff] %vm79, %v651
  %v656 = vld [vmem:[#allocation2] sm:$0xff]
  %v657 = vpack.c.bf16 %v656, %v656
  %v658 = vld [vmem:[%s3] sm:$0xf]
  %v659 = vld [vmem:[%s3 + $0x4] sm:$0xf]
  %v660 = vld [vmem:[%s3 + $0x8] sm:$0xf]
  %v661 = vld [vmem:[%s3 + $0xc] sm:$0xf]
  %v666 = vunpack.c.l.b16 %v658
  %v667 = vunpack.c.l.b16 %v659
  %v668 = vunpack.c.l.b16 %v660
  %v669 = vunpack.c.l.b16 %v661
  %v670 = vpack.c.b16 %v667, %v666
  %v671 = vpack.c.b16 %v669, %v668
  %v675 = vsel %vm79, %v657, 0
  %677 = vmatpush.bf16.msra.mxu0 0
  %678 = vmatpush.bf16.msra.mxu0 0
  %679 = vmatpush.bf16.msra.mxu0 0
  %680 = vmatpush.bf16.msra.mxu0 0
  %681 = vmatpush.bf16.msra.mxu0 0
  %682 = vmatpush.bf16.msra.mxu0 0
  %683 = vmatpush.bf16.msra.mxu0 %v671
  %684 = vmatpush.bf16.msra.mxu0 %v670
  %685 = vmatmul.bf16.gmra.mxu0 %v675
  %v686 = vpop.f32.mrf.mxu0
  %v687 = vadd.f32 0.0, %v686
  %v688 = vpop.f32.mrf.mxu0
  %689 = vdwg.mxu0
  %s690 = scalar_lea.vmem [#allocation3], 48
  %v691 = vld [vmem:[%s690] sm:$0xff]
  %v692 = vadd.f32 %v691, %v687
  %v693 = vxor.u32 %v692, 2147483648
  %v694 = vmul.f32 %v693, 1.442695
  %v695 = vpow.pop %v694
  %v696 = vadd.f32 %v695, 1.0
  %v697 = vrcp.pop %v696
  %v698 = vmul.f32 %v696, %v697
  %v699 = vsub.f32 1.0, %v698
  %v700 = vmul.f32 %v697, %v699
  %v701 = vadd.f32 %v697, %v700
  %vm702 = vweird.f32 %v696
  %vm703 = vweird.f32 %v697
  %vm704 = vmor %vm702, %vm703
  %v705 = vsel %vm704, %v697, %v701
  %v706 = vand.u32 2147483647, %v696
  %vm707 = vcmp.eq.f32.partialorder %v706, 8.507059e+37
  %v708 = vand.u32 %v696, 2147483648
  %v709 = vor.u32 1.1754944e-38, %v708
  %v710 = vsel %vm707, %v709, %v705
  %v711 = vmul.f32 1.0, %v710
  %v712 = vadd.f32 %v687, %v189
  %714 = vrot.lane.b32.xlu0 %v712, 64
  %v715 = vpop.permute.xlu0 %714
  %v717 = vmul.f32 %v711, %v715
  %719 = vrot.lane.b32.xlu0 %v717, 64
  %v720 = vpop.permute.xlu0 %719
  %v722 = vadd.f32 %v691, %v720
  %v723 = vtanh.pop %v722
  %v724 = vsub.f32 1.0, %v711
  %726 = vrot.lane.b32.xlu0 %v723, 96
  %v727 = vpop.permute.xlu0 %726
  %v729 = vmul.f32 %v724, %v727
  %731 = vrot.lane.b32.xlu0 %v656, 32
  %v732 = vpop.permute.xlu0 %731
  %v734 = vmul.f32 %v711, %v732
  %v735 = vadd.f32 %v729, %v734
  %737 = vrot.lane.b32.xlu0 %v735, 96
  %v738 = vpop.permute.xlu0 %737
  %740 = vst.msk [vmem:[#allocation2] sm:$0xff] %vm79, %v738
  %s741 = scalar_lea.vmem %s6, 48
  %742 = vst.msk [vmem:[%s741] sm:$0xff] %vm79, %v738
  %v743 = vld [vmem:[#allocation2] sm:$0xff]
  %v744 = vpack.c.bf16 %v743, %v743
  %v745 = vld [vmem:[%s3] sm:$0xf]
  %v746 = vld [vmem:[%s3 + $0x4] sm:$0xf]
  %v747 = vld [vmem:[%s3 + $0x8] sm:$0xf]
  %v748 = vld [vmem:[%s3 + $0xc] sm:$0xf]
  %v753 = vunpack.c.l.b16 %v745
  %v754 = vunpack.c.l.b16 %v746
  %v755 = vunpack.c.l.b16 %v747
  %v756 = vunpack.c.l.b16 %v748
  %v757 = vpack.c.b16 %v754, %v753
  %v758 = vpack.c.b16 %v756, %v755
  %v762 = vsel %vm79, %v744, 0
  %764 = vmatpush.bf16.msra.mxu0 0
  %765 = vmatpush.bf16.msra.mxu0 0
  %766 = vmatpush.bf16.msra.mxu0 0
  %767 = vmatpush.bf16.msra.mxu0 0
  %768 = vmatpush.bf16.msra.mxu0 0
  %769 = vmatpush.bf16.msra.mxu0 0
  %770 = vmatpush.bf16.msra.mxu0 %v758
  %771 = vmatpush.bf16.msra.mxu0 %v757
  %772 = vmatmul.bf16.gmra.mxu0 %v762
  %v773 = vpop.f32.mrf.mxu0
  %v774 = vadd.f32 0.0, %v773
  %v775 = vpop.f32.mrf.mxu0
  %776 = vdwg.mxu0
  %s777 = scalar_lea.vmem [#allocation3], 56
  %v778 = vld [vmem:[%s777] sm:$0xff]
  %v779 = vadd.f32 %v778, %v774
  %v780 = vxor.u32 %v779, 2147483648
  %v781 = vmul.f32 %v780, 1.442695
  %v782 = vpow.pop %v781
  %v783 = vadd.f32 %v782, 1.0
  %v784 = vrcp.pop %v783
  %v785 = vmul.f32 %v783, %v784
  %v786 = vsub.f32 1.0, %v785
  %v787 = vmul.f32 %v784, %v786
  %v788 = vadd.f32 %v784, %v787
  %vm789 = vweird.f32 %v783
  %vm790 = vweird.f32 %v784
  %vm791 = vmor %vm789, %vm790
  %v792 = vsel %vm791, %v784, %v788
  %v793 = vand.u32 2147483647, %v783
  %vm794 = vcmp.eq.f32.partialorder %v793, 8.507059e+37
  %v795 = vand.u32 %v783, 2147483648
  %v796 = vor.u32 1.1754944e-38, %v795
  %v797 = vsel %vm794, %v796, %v792
  %v798 = vmul.f32 1.0, %v797
  %v799 = vadd.f32 %v774, %v189
  %801 = vrot.lane.b32.xlu0 %v799, 64
  %v802 = vpop.permute.xlu0 %801
  %v804 = vmul.f32 %v798, %v802
  %806 = vrot.lane.b32.xlu0 %v804, 64
  %v807 = vpop.permute.xlu0 %806
  %v809 = vadd.f32 %v778, %v807
  %v810 = vtanh.pop %v809
  %v811 = vsub.f32 1.0, %v798
  %813 = vrot.lane.b32.xlu0 %v810, 96
  %v814 = vpop.permute.xlu0 %813
  %v816 = vmul.f32 %v811, %v814
  %818 = vrot.lane.b32.xlu0 %v743, 32
  %v819 = vpop.permute.xlu0 %818
  %v821 = vmul.f32 %v798, %v819
  %v822 = vadd.f32 %v816, %v821
  %824 = vrot.lane.b32.xlu0 %v822, 96
  %v825 = vpop.permute.xlu0 %824
  %827 = vst.msk [vmem:[#allocation2] sm:$0xff] %vm79, %v825
  %s828 = scalar_lea.vmem %s6, 56
  %829 = vst.msk [vmem:[%s828] sm:$0xff] %vm79, %v825
  // Predicated region
  $region30: #{decoder_forward.2} parent=0 // pred_check
    _
  $region31: #{decoder_forward.2} parent=0 // pred_check_branch
    %831 = sbr.rel (0) target = $region33
  $region32: #{decoder_forward.2} parent=0 // pred_region
    _
  $region33: #{decoder_forward.2} parent=0 // pred_fallthru
    _
  // Predicated region
  $region34: #{decoder_forward.2} parent=0 // pred_check
    _
  $region35: #{decoder_forward.2} parent=0 // pred_check_branch
    %833 = sbr.rel (0) target = $region37
  $region36: #{decoder_forward.2} parent=0 // pred_region
    _
  $region37: #{decoder_forward.2} parent=0 // pred_fallthru
    _

</llo_original>
